<compile_context>
chip_gen: v7x
topology: tpu7x:2x2x1
jax: 0.10.0
libtpu: 0.0.40
codegen_flags: <defaults>
</compile_context>

<pallas_src>
import jax
import jax.numpy as jnp
from jax import lax
from jax.experimental import pallas as pl
from jax.experimental.pallas import tpu as pltpu


# ---------------- Mish ----------------

def _mish_in_kernel(v):
    # x * tanh(softplus(x)) with one EUP exp + one approx reciprocal:
    #   t = exp(min(x, 20));  tanh(softplus(x)) = (t^2 + 2t) / (t^2 + 2t + 2)
    t = jnp.exp(jnp.minimum(v, 20.0))
    num = t * (t + 2.0)
    return v * num * pl.reciprocal(num + 2.0, approx=True)


def _mish_ref(v):
    # Reference form (matches torch: x * tanh(softplus(x))), numerically safe.
    sp = jnp.maximum(v, 0.0) + jnp.log1p(jnp.exp(-jnp.abs(v)))
    return v * jnp.tanh(sp)


# ---------------- kernel ----------------

def _make_kernel(width, nb_branches, scale, seq_len, batch_tile):
    f32 = jnp.float32
    bf16 = jnp.bfloat16

    def kernel(x_ref, w1_ref, s1_ref, b1_ref, wb_ref, bb_ref, w3_ref, b3_ref,
               o_ref):
        # Weights are tiny VMEM-resident blocks (constant index_map); load them
        # once per grid step, outside the per-batch loop.
        w1c = [w1_ref[c] for c in range(scale)]                # (w, Cin) bf16
        s1c = [s1_ref[c] for c in range(scale)]                # (w, 1)  f32
        b1c = [b1_ref[c] for c in range(scale)]
        wbt = [[wb_ref[i * 3 + t] for t in range(3)]           # (w, w)  bf16
               for i in range(nb_branches)]
        bbc = [bb_ref[i] for i in range(nb_branches)]          # (w, 1)  f32
        w3c = [w3_ref[c] for c in range(scale)]                # (Cout, w) bf16
        b3v = b3_ref[...]                                      # (Cout, 1) f32
        zcol = jnp.zeros((width, 1), f32)

        def per_batch(b):
            x_f32 = x_ref[b]                                   # (Cin, L) f32
            x_bf = x_f32.astype(bf16)

            # conv1 (1x1) -> Mish -> BN1, one matmul per width-chunk so no
            # sub-8 sublane slicing of the activation is ever needed.
            chunks = []
            for c in range(scale):
                h = jnp.dot(w1c[c], x_bf, preferred_element_type=f32)  # (w, L)
                h = _mish_in_kernel(h)
                chunks.append(h * s1c[c] + b1c[c])

            # conv3 (1x1, s3 folded in) as an accumulation of per-chunk
            # matmuls; start from the trailing untouched chunk xs[scale-1].
            acc = jnp.dot(w3c[scale - 1], chunks[scale - 1].astype(bf16),
                          preferred_element_type=f32)          # (Cout, L)

            y = chunks[0]
            for idx in range(nb_branches):
                if idx > 0:
                    y = y + chunks[idx]
                # k=3, pad=1 conv along L: zero-padded +/-1 shifts via lane
                # slices (whole L per batch => exact sequence boundaries).
                y_prev = jnp.concatenate([zcol, y[:, :seq_len - 1]], axis=1)
                y_next = jnp.concatenate([y[:, 1:], zcol], axis=1)
                z = (jnp.dot(wbt[idx][0], y_prev.astype(bf16),
                             preferred_element_type=f32)
                     + jnp.dot(wbt[idx][1], y.astype(bf16),
                               preferred_element_type=f32)
                     + jnp.dot(wbt[idx][2], y_next.astype(bf16),
                               preferred_element_type=f32))
                y = _mish_in_kernel(z + bbc[idx])               # BN bias + Mish
                acc = acc + jnp.dot(w3c[idx], y.astype(bf16),
                                    preferred_element_type=f32)

            out = acc + b3v + x_f32          # residual in f32 (downsample=None)
            o_ref[b] = _mish_in_kernel(out).astype(o_ref.dtype)

        if batch_tile <= 8:
            # Small tiles (incl. the shipped test): fully static indexing.
            for b in range(batch_tile):
                per_batch(b)
        else:
            # Large VMEM-sized tiles: keep the body as a real loop.
            pl.loop(0, batch_tile)(per_batch)

    return kernel


# ---------------- wrapper ----------------

def res2block_pallas(x_ncl, params, width, nb_branches, scale,
                     batch_tile=None, out_dtype=jnp.bfloat16,
                     target_block_bytes=4 * 1024 * 1024,
                     vmem_limit_bytes=None, input_buffer_count=None):
    B, cin, L = x_ncl.shape
    cout = params['w3'].shape[0]
    ws = width * scale
    assert scale >= 2
    assert cin == cout, "downsample=None path requires Cin == Cout*expansion"
    assert params['w1'].shape[0] == ws

    x = x_ncl.astype(jnp.float32)   # NCL, f32; kernel casts matmul operands

    # --- tile selection: VMEM-sized, sweepable; keep >=2 (pref. even) tiles so
    # the "parallel" grid axis can split across v7x's 2 TensorCores. ---------
    if batch_tile is None:
        per_batch_in = cin * L * 4
        cap = max(1, target_block_bytes // per_batch_in)
        divs = [d for d in range(1, B + 1) if B % d == 0]
        cands = ([d for d in divs if d <= cap and B // d >= 2]
                 or [d for d in divs if d <= cap] or [1])
        even = [d for d in cands if (B // d) % 2 == 0]
        batch_tile = max(even) if even else max(cands)
    assert B % batch_tile == 0
    n_tiles = B // batch_tile

    # --- per-generation VMEM budget: phys/2 => 32 MiB v7x, 64 MiB v5e/v6e ---
    if vmem_limit_bytes is None:
        try:
            phys = int(pltpu.get_tpu_info().vmem_capacity_bytes)
        except Exception:
            phys = 64 * 1024 * 1024
        vmem_limit_bytes = max(32 * 1024 * 1024, phys // 2)

    # --- weight prep: matmul-ready, BN scales folded where linear ----------
    bf = jnp.bfloat16
    f32 = jnp.float32
    w1s = params['w1'][:, :, 0].reshape(scale, width, cin).astype(bf)   # (scale, w, Cin)
    s1 = params['s1'].reshape(scale, width, 1).astype(f32)
    b1 = params['b1'].reshape(scale, width, 1).astype(f32)
    # branch convs: fold BN scale sb into output channels of each tap
    wbs = params['wb'] * params['sb'][:, :, None, None]                 # (nb, w, w, 3)
    wbs = jnp.transpose(wbs, (0, 3, 1, 2)).reshape(nb_branches * 3, width, width).astype(bf)
    bbs = params['bb'].reshape(nb_branches, width, 1).astype(f32)
    # conv3: fold BN scale s3, split per input chunk
    w3f = params['w3'][:, :, 0] * params['s3'][:, None]                 # (Cout, ws)
    w3s = jnp.transpose(w3f.reshape(cout, scale, width), (1, 0, 2)).astype(bf)  # (scale, Cout, w)
    b3 = params['b3'].reshape(cout, 1).astype(f32)

    def resident(a):
        nd = a.ndim
        return pl.BlockSpec(a.shape, lambda *_, nd=nd: (0,) * nd)

    x_spec_kwargs = {}
    if input_buffer_count is not None and input_buffer_count != 2:
        # Deepen pipelining on the only streaming input if DMA is exposed.
        x_spec_kwargs["pipeline_mode"] = pl.Buffered(input_buffer_count)
    x_spec = pl.BlockSpec((batch_tile, cin, L), lambda i: (i, 0, 0),
                          **x_spec_kwargs)

    kernel = _make_kernel(width, nb_branches, scale, L, batch_tile)
    out = pl.pallas_call(
        kernel,
        out_shape=jax.ShapeDtypeStruct((B, cout, L), out_dtype),
        grid=(n_tiles,),
        in_specs=[x_spec,
                  resident(w1s), resident(s1), resident(b1),
                  resident(wbs), resident(bbs),
                  resident(w3s), resident(b3)],
        out_specs=pl.BlockSpec((batch_tile, cout, L), lambda i: (i, 0, 0)),
        compiler_params=pltpu.CompilerParams(
            dimension_semantics=("parallel",),
            vmem_limit_bytes=vmem_limit_bytes),
    )(x, w1s, s1, b1, wbs, bbs, w3s, b3)

    return out   # NCL, no wrapper transposes


# ---------------- deterministic synthetic parameters ----------------

def init_params(key, inplanes, planes, base_width, groups, scale, expansion=4):
    width = int(planes * (base_width / 64.0)) * groups
    nb = max(scale, 2) - 1
    keys = jax.random.split(key, 16)

    def bn_fold(k, c):
        k1, k2, k3, k4 = jax.random.split(k, 4)
        gamma = jax.random.uniform(k1, (c,), jnp.float32, 0.5, 1.5)
        beta = jax.random.normal(k2, (c,), jnp.float32) * 0.1
        mean = jax.random.normal(k3, (c,), jnp.float32) * 0.1
        var = jax.random.uniform(k4, (c,), jnp.float32, 0.5, 1.5)
        s = gamma / jnp.sqrt(var + 1e-5)
        return s, beta - mean * s

    p = {}
    p['w1'] = jax.random.normal(keys[0], (width * scale, inplanes, 1), jnp.float32) * 0.1
    p['s1'], p['b1'] = bn_fold(keys[1], width * scale)
    p['wb'] = jax.random.normal(keys[2], (nb, width, width, 3), jnp.float32) * 0.2
    sb, bb = [], []
    for i in range(nb):
        s_, b_ = bn_fold(keys[3 + i], width)
        sb.append(s_)
        bb.append(b_)
    p['sb'] = jnp.stack(sb)
    p['bb'] = jnp.stack(bb)
    p['w3'] = jax.random.normal(keys[10], (planes * expansion, width * scale, 1), jnp.float32) * 0.1
    p['s3'], p['b3'] = bn_fold(keys[11], planes * expansion)
    return p, width, nb


# ---------------- pure-JAX reference (mirrors torch forward, f32) ----------------

def _conv1d(x, w, pad):
    return lax.conv_general_dilated(x, w, window_strides=(1,), padding=[(pad, pad)],
                                    dimension_numbers=('NCH', 'OIH', 'NCH'))


def ref_forward(x, p, width, nb, scale):
    out = _conv1d(x, p['w1'], 0)
    out = _mish_ref(out)
    out = out * p['s1'][None, :, None] + p['b1'][None, :, None]
    xs = [out[:, i * width:(i + 1) * width, :] for i in range(scale)]
    y = jnp.zeros_like(xs[0])
    outs = []
    for idx in range(nb):
        y = y + xs[idx]
        y = _conv1d(y, p['wb'][idx], 1)
        y = _mish_ref(y * p['sb'][idx][None, :, None] + p['bb'][idx][None, :, None])
        outs.append(y)
    outs.append(xs[nb])
    cat = jnp.concatenate(outs, axis=1)
    out = _conv1d(cat, p['w3'], 0)
    out = out * p['s3'][None, :, None] + p['b3'][None, :, None]
    out = out + x
    return _mish_ref(out)


if __name__ == "__main__":
    # Res2Block(inplanes=64, planes=16, base_width=16, scale=4) ->
    # width=4, conv1: 64->16, 3 branch convs 4->4 (k=3,pad=1), conv3: 16->64.
    B, L = 2, 16
    inplanes, planes, base_width, groups, scale = 64, 16, 16, 1, 4

    key = jax.random.PRNGKey(0)
    kx, kp = jax.random.split(key)
    params, width, nb = init_params(kp, inplanes, planes, base_width, groups, scale)
    x = jax.random.normal(kx, (B, inplanes, L), jnp.float32)

    # auto tile choice -> batch_tile=1, grid=(2,): exercises the parallel grid.
    out = res2block_pallas(x, params, width, nb, scale)
    out = jax.block_until_ready(out)

    ref = ref_forward(x, params, width, nb, scale)
    assert out.shape == ref.shape == (B, planes * 4, L)
    max_err = float(jnp.max(jnp.abs(out.astype(jnp.float32) - ref)))
    # Tolerance relaxed vs pure-f32 reference: matmul operands are bf16 in the
    # kernel, the output is stored as bf16, and the Mish uses an approximate
    # EUP reciprocal.  Structural errors (wrong shift/fold) would be O(1).
    assert max_err < 7.5e-2, f"mismatch vs reference: max_err={max_err}"
    print("KERNEL_OK")
</pallas_src>

<mosaic_0001>
module attributes {stable_mosaic.version = 11 : i64} {
  func.func @kernel(%arg0: i32, %arg1: memref<1x64x16xf32, #tpu.memory_space<vmem>>, %arg2: memref<4x4x64xbf16, #tpu.memory_space<vmem>>, %arg3: memref<4x4x1xf32, #tpu.memory_space<vmem>>, %arg4: memref<4x4x1xf32, #tpu.memory_space<vmem>>, %arg5: memref<9x4x4xbf16, #tpu.memory_space<vmem>>, %arg6: memref<3x4x1xf32, #tpu.memory_space<vmem>>, %arg7: memref<4x64x4xbf16, #tpu.memory_space<vmem>>, %arg8: memref<64x1xf32, #tpu.memory_space<vmem>>, %arg9: memref<1x64x16xbf16, #tpu.memory_space<vmem>>) attributes {dimension_semantics = [#tpu.dimension_semantics<parallel>], iteration_bounds = array<i64: 2>, scalar_prefetch = 0 : i64, scratch_operands = 0 : i64, tpu.core_type = #tpu.core_type<tc>, window_params = [{transform_indices = @transform_0, window_bounds = array<i64: 1, 64, 16>}, {pipeline_mode = #tpu.pipeline_mode<synchronous>, transform_indices = @transform_1, window_bounds = array<i64: 4, 4, 64>}, {pipeline_mode = #tpu.pipeline_mode<synchronous>, transform_indices = @transform_2, window_bounds = array<i64: 4, 4, 1>}, {pipeline_mode = #tpu.pipeline_mode<synchronous>, transform_indices = @transform_3, window_bounds = array<i64: 4, 4, 1>}, {pipeline_mode = #tpu.pipeline_mode<synchronous>, transform_indices = @transform_4, window_bounds = array<i64: 9, 4, 4>}, {pipeline_mode = #tpu.pipeline_mode<synchronous>, transform_indices = @transform_5, window_bounds = array<i64: 3, 4, 1>}, {pipeline_mode = #tpu.pipeline_mode<synchronous>, transform_indices = @transform_6, window_bounds = array<i64: 4, 64, 4>}, {pipeline_mode = #tpu.pipeline_mode<synchronous>, transform_indices = @transform_7, window_bounds = array<i64: 64, 1>}, {transform_indices = @transform_8, window_bounds = array<i64: 1, 64, 16>}]} {
    %c0 = arith.constant 0 : index
    %c0_0 = arith.constant 0 : index
    %c0_1 = arith.constant 0 : index
    %0 = vector.load %arg2[%c0, %c0_0, %c0_1] : memref<4x4x64xbf16, #tpu.memory_space<vmem>>, vector<1x4x64xbf16>
    %1 = vector.shape_cast %0 : vector<1x4x64xbf16> to vector<4x64xbf16>
    %c1 = arith.constant 1 : index
    %c0_2 = arith.constant 0 : index
    %c0_3 = arith.constant 0 : index
    %2 = vector.load %arg2[%c1, %c0_2, %c0_3] : memref<4x4x64xbf16, #tpu.memory_space<vmem>>, vector<1x4x64xbf16>
    %3 = vector.shape_cast %2 : vector<1x4x64xbf16> to vector<4x64xbf16>
    %c2 = arith.constant 2 : index
    %c0_4 = arith.constant 0 : index
    %c0_5 = arith.constant 0 : index
    %4 = vector.load %arg2[%c2, %c0_4, %c0_5] : memref<4x4x64xbf16, #tpu.memory_space<vmem>>, vector<1x4x64xbf16>
    %5 = vector.shape_cast %4 : vector<1x4x64xbf16> to vector<4x64xbf16>
    %c3 = arith.constant 3 : index
    %c0_6 = arith.constant 0 : index
    %c0_7 = arith.constant 0 : index
    %6 = vector.load %arg2[%c3, %c0_6, %c0_7] : memref<4x4x64xbf16, #tpu.memory_space<vmem>>, vector<1x4x64xbf16>
    %7 = vector.shape_cast %6 : vector<1x4x64xbf16> to vector<4x64xbf16>
    %c0_8 = arith.constant 0 : index
    %c0_9 = arith.constant 0 : index
    %c0_10 = arith.constant 0 : index
    %8 = vector.load %arg3[%c0_8, %c0_9, %c0_10] : memref<4x4x1xf32, #tpu.memory_space<vmem>>, vector<1x4x1xf32>
    %9 = vector.shape_cast %8 : vector<1x4x1xf32> to vector<4x1xf32>
    %c1_11 = arith.constant 1 : index
    %c0_12 = arith.constant 0 : index
    %c0_13 = arith.constant 0 : index
    %10 = vector.load %arg3[%c1_11, %c0_12, %c0_13] : memref<4x4x1xf32, #tpu.memory_space<vmem>>, vector<1x4x1xf32>
    %11 = vector.shape_cast %10 : vector<1x4x1xf32> to vector<4x1xf32>
    %c2_14 = arith.constant 2 : index
    %c0_15 = arith.constant 0 : index
    %c0_16 = arith.constant 0 : index
    %12 = vector.load %arg3[%c2_14, %c0_15, %c0_16] : memref<4x4x1xf32, #tpu.memory_space<vmem>>, vector<1x4x1xf32>
    %13 = vector.shape_cast %12 : vector<1x4x1xf32> to vector<4x1xf32>
    %c3_17 = arith.constant 3 : index
    %c0_18 = arith.constant 0 : index
    %c0_19 = arith.constant 0 : index
    %14 = vector.load %arg3[%c3_17, %c0_18, %c0_19] : memref<4x4x1xf32, #tpu.memory_space<vmem>>, vector<1x4x1xf32>
    %15 = vector.shape_cast %14 : vector<1x4x1xf32> to vector<4x1xf32>
    %c0_20 = arith.constant 0 : index
    %c0_21 = arith.constant 0 : index
    %c0_22 = arith.constant 0 : index
    %16 = vector.load %arg4[%c0_20, %c0_21, %c0_22] : memref<4x4x1xf32, #tpu.memory_space<vmem>>, vector<1x4x1xf32>
    %17 = vector.shape_cast %16 : vector<1x4x1xf32> to vector<4x1xf32>
    %c1_23 = arith.constant 1 : index
    %c0_24 = arith.constant 0 : index
    %c0_25 = arith.constant 0 : index
    %18 = vector.load %arg4[%c1_23, %c0_24, %c0_25] : memref<4x4x1xf32, #tpu.memory_space<vmem>>, vector<1x4x1xf32>
    %19 = vector.shape_cast %18 : vector<1x4x1xf32> to vector<4x1xf32>
    %c2_26 = arith.constant 2 : index
    %c0_27 = arith.constant 0 : index
    %c0_28 = arith.constant 0 : index
    %20 = vector.load %arg4[%c2_26, %c0_27, %c0_28] : memref<4x4x1xf32, #tpu.memory_space<vmem>>, vector<1x4x1xf32>
    %21 = vector.shape_cast %20 : vector<1x4x1xf32> to vector<4x1xf32>
    %c3_29 = arith.constant 3 : index
    %c0_30 = arith.constant 0 : index
    %c0_31 = arith.constant 0 : index
    %22 = vector.load %arg4[%c3_29, %c0_30, %c0_31] : memref<4x4x1xf32, #tpu.memory_space<vmem>>, vector<1x4x1xf32>
    %23 = vector.shape_cast %22 : vector<1x4x1xf32> to vector<4x1xf32>
    %c0_32 = arith.constant 0 : index
    %c0_33 = arith.constant 0 : index
    %c0_34 = arith.constant 0 : index
    %24 = vector.load %arg5[%c0_32, %c0_33, %c0_34] : memref<9x4x4xbf16, #tpu.memory_space<vmem>>, vector<1x4x4xbf16>
    %25 = vector.shape_cast %24 : vector<1x4x4xbf16> to vector<4x4xbf16>
    %c1_35 = arith.constant 1 : index
    %c0_36 = arith.constant 0 : index
    %c0_37 = arith.constant 0 : index
    %26 = vector.load %arg5[%c1_35, %c0_36, %c0_37] : memref<9x4x4xbf16, #tpu.memory_space<vmem>>, vector<1x4x4xbf16>
    %27 = vector.shape_cast %26 : vector<1x4x4xbf16> to vector<4x4xbf16>
    %c2_38 = arith.constant 2 : index
    %c0_39 = arith.constant 0 : index
    %c0_40 = arith.constant 0 : index
    %28 = vector.load %arg5[%c2_38, %c0_39, %c0_40] : memref<9x4x4xbf16, #tpu.memory_space<vmem>>, vector<1x4x4xbf16>
    %29 = vector.shape_cast %28 : vector<1x4x4xbf16> to vector<4x4xbf16>
    %c3_41 = arith.constant 3 : index
    %c0_42 = arith.constant 0 : index
    %c0_43 = arith.constant 0 : index
    %30 = vector.load %arg5[%c3_41, %c0_42, %c0_43] : memref<9x4x4xbf16, #tpu.memory_space<vmem>>, vector<1x4x4xbf16>
    %31 = vector.shape_cast %30 : vector<1x4x4xbf16> to vector<4x4xbf16>
    %c4 = arith.constant 4 : index
    %c0_44 = arith.constant 0 : index
    %c0_45 = arith.constant 0 : index
    %32 = vector.load %arg5[%c4, %c0_44, %c0_45] : memref<9x4x4xbf16, #tpu.memory_space<vmem>>, vector<1x4x4xbf16>
    %33 = vector.shape_cast %32 : vector<1x4x4xbf16> to vector<4x4xbf16>
    %c5 = arith.constant 5 : index
    %c0_46 = arith.constant 0 : index
    %c0_47 = arith.constant 0 : index
    %34 = vector.load %arg5[%c5, %c0_46, %c0_47] : memref<9x4x4xbf16, #tpu.memory_space<vmem>>, vector<1x4x4xbf16>
    %35 = vector.shape_cast %34 : vector<1x4x4xbf16> to vector<4x4xbf16>
    %c6 = arith.constant 6 : index
    %c0_48 = arith.constant 0 : index
    %c0_49 = arith.constant 0 : index
    %36 = vector.load %arg5[%c6, %c0_48, %c0_49] : memref<9x4x4xbf16, #tpu.memory_space<vmem>>, vector<1x4x4xbf16>
    %37 = vector.shape_cast %36 : vector<1x4x4xbf16> to vector<4x4xbf16>
    %c7 = arith.constant 7 : index
    %c0_50 = arith.constant 0 : index
    %c0_51 = arith.constant 0 : index
    %38 = vector.load %arg5[%c7, %c0_50, %c0_51] : memref<9x4x4xbf16, #tpu.memory_space<vmem>>, vector<1x4x4xbf16>
    %39 = vector.shape_cast %38 : vector<1x4x4xbf16> to vector<4x4xbf16>
    %c8 = arith.constant 8 : index
    %c0_52 = arith.constant 0 : index
    %c0_53 = arith.constant 0 : index
    %40 = vector.load %arg5[%c8, %c0_52, %c0_53] : memref<9x4x4xbf16, #tpu.memory_space<vmem>>, vector<1x4x4xbf16>
    %41 = vector.shape_cast %40 : vector<1x4x4xbf16> to vector<4x4xbf16>
    %c0_54 = arith.constant 0 : index
    %c0_55 = arith.constant 0 : index
    %c0_56 = arith.constant 0 : index
    %42 = vector.load %arg6[%c0_54, %c0_55, %c0_56] : memref<3x4x1xf32, #tpu.memory_space<vmem>>, vector<1x4x1xf32>
    %43 = vector.shape_cast %42 : vector<1x4x1xf32> to vector<4x1xf32>
    %c1_57 = arith.constant 1 : index
    %c0_58 = arith.constant 0 : index
    %c0_59 = arith.constant 0 : index
    %44 = vector.load %arg6[%c1_57, %c0_58, %c0_59] : memref<3x4x1xf32, #tpu.memory_space<vmem>>, vector<1x4x1xf32>
    %45 = vector.shape_cast %44 : vector<1x4x1xf32> to vector<4x1xf32>
    %c2_60 = arith.constant 2 : index
    %c0_61 = arith.constant 0 : index
    %c0_62 = arith.constant 0 : index
    %46 = vector.load %arg6[%c2_60, %c0_61, %c0_62] : memref<3x4x1xf32, #tpu.memory_space<vmem>>, vector<1x4x1xf32>
    %47 = vector.shape_cast %46 : vector<1x4x1xf32> to vector<4x1xf32>
    %c0_63 = arith.constant 0 : index
    %c0_64 = arith.constant 0 : index
    %c0_65 = arith.constant 0 : index
    %48 = vector.load %arg7[%c0_63, %c0_64, %c0_65] : memref<4x64x4xbf16, #tpu.memory_space<vmem>>, vector<1x64x4xbf16>
    %49 = vector.shape_cast %48 : vector<1x64x4xbf16> to vector<64x4xbf16>
    %c1_66 = arith.constant 1 : index
    %c0_67 = arith.constant 0 : index
    %c0_68 = arith.constant 0 : index
    %50 = vector.load %arg7[%c1_66, %c0_67, %c0_68] : memref<4x64x4xbf16, #tpu.memory_space<vmem>>, vector<1x64x4xbf16>
    %51 = vector.shape_cast %50 : vector<1x64x4xbf16> to vector<64x4xbf16>
    %c2_69 = arith.constant 2 : index
    %c0_70 = arith.constant 0 : index
    %c0_71 = arith.constant 0 : index
    %52 = vector.load %arg7[%c2_69, %c0_70, %c0_71] : memref<4x64x4xbf16, #tpu.memory_space<vmem>>, vector<1x64x4xbf16>
    %53 = vector.shape_cast %52 : vector<1x64x4xbf16> to vector<64x4xbf16>
    %c3_72 = arith.constant 3 : index
    %c0_73 = arith.constant 0 : index
    %c0_74 = arith.constant 0 : index
    %54 = vector.load %arg7[%c3_72, %c0_73, %c0_74] : memref<4x64x4xbf16, #tpu.memory_space<vmem>>, vector<1x64x4xbf16>
    %55 = vector.shape_cast %54 : vector<1x64x4xbf16> to vector<64x4xbf16>
    %c0_75 = arith.constant 0 : index
    %c0_76 = arith.constant 0 : index
    %56 = vector.load %arg8[%c0_75, %c0_76] : memref<64x1xf32, #tpu.memory_space<vmem>>, vector<64x1xf32>
    %cst = arith.constant 0.000000e+00 : f32
    %57 = vector.broadcast %cst : f32 to vector<4x1xf32>
    %c0_77 = arith.constant 0 : index
    %c0_78 = arith.constant 0 : index
    %c0_79 = arith.constant 0 : index
    %58 = vector.load %arg1[%c0_77, %c0_78, %c0_79] : memref<1x64x16xf32, #tpu.memory_space<vmem>>, vector<1x64x16xf32>
    %59 = vector.shape_cast %58 : vector<1x64x16xf32> to vector<64x16xf32>
    %60 = arith.truncf %59 : vector<64x16xf32> to vector<64x16xbf16>
    %cst_80 = arith.constant dense<0.000000e+00> : vector<4x16xf32>
    %61 = tpu.matmul %1, %60, %cst_80 {dimension_numbers = #tpu.dot_dimension_numbers<[1], [0], [0], [1], [0, 0, 1, 1], [], []>} : vector<4x64xbf16>, vector<64x16xbf16>, vector<4x16xf32> -> vector<4x16xf32>
    %cst_81 = arith.constant 2.000000e+01 : f32
    %62 = vector.broadcast %cst_81 : f32 to vector<4x16xf32>
    %63 = arith.minimumf %61, %62 : vector<4x16xf32>
    %64 = math.exp %63 : vector<4x16xf32>
    %cst_82 = arith.constant 2.000000e+00 : f32
    %65 = vector.broadcast %cst_82 : f32 to vector<4x16xf32>
    %66 = arith.addf %64, %65 : vector<4x16xf32>
    %67 = arith.mulf %64, %66 : vector<4x16xf32>
    %68 = arith.mulf %61, %67 : vector<4x16xf32>
    %cst_83 = arith.constant 2.000000e+00 : f32
    %69 = vector.broadcast %cst_83 : f32 to vector<4x16xf32>
    %70 = arith.addf %67, %69 : vector<4x16xf32>
    %71 = tpu.reciprocal %70 {approx = true} : vector<4x16xf32> -> vector<4x16xf32>
    %72 = arith.mulf %68, %71 : vector<4x16xf32>
    %73 = vector.broadcast %9 : vector<4x1xf32> to vector<4x16xf32>
    %74 = arith.mulf %72, %73 : vector<4x16xf32>
    %75 = vector.broadcast %17 : vector<4x1xf32> to vector<4x16xf32>
    %76 = arith.addf %74, %75 : vector<4x16xf32>
    %cst_84 = arith.constant dense<0.000000e+00> : vector<4x16xf32>
    %77 = tpu.matmul %3, %60, %cst_84 {dimension_numbers = #tpu.dot_dimension_numbers<[1], [0], [0], [1], [0, 0, 1, 1], [], []>} : vector<4x64xbf16>, vector<64x16xbf16>, vector<4x16xf32> -> vector<4x16xf32>
    %cst_85 = arith.constant 2.000000e+01 : f32
    %78 = vector.broadcast %cst_85 : f32 to vector<4x16xf32>
    %79 = arith.minimumf %77, %78 : vector<4x16xf32>
    %80 = math.exp %79 : vector<4x16xf32>
    %cst_86 = arith.constant 2.000000e+00 : f32
    %81 = vector.broadcast %cst_86 : f32 to vector<4x16xf32>
    %82 = arith.addf %80, %81 : vector<4x16xf32>
    %83 = arith.mulf %80, %82 : vector<4x16xf32>
    %84 = arith.mulf %77, %83 : vector<4x16xf32>
    %cst_87 = arith.constant 2.000000e+00 : f32
    %85 = vector.broadcast %cst_87 : f32 to vector<4x16xf32>
    %86 = arith.addf %83, %85 : vector<4x16xf32>
    %87 = tpu.reciprocal %86 {approx = true} : vector<4x16xf32> -> vector<4x16xf32>
    %88 = arith.mulf %84, %87 : vector<4x16xf32>
    %89 = vector.broadcast %11 : vector<4x1xf32> to vector<4x16xf32>
    %90 = arith.mulf %88, %89 : vector<4x16xf32>
    %91 = vector.broadcast %19 : vector<4x1xf32> to vector<4x16xf32>
    %92 = arith.addf %90, %91 : vector<4x16xf32>
    %cst_88 = arith.constant dense<0.000000e+00> : vector<4x16xf32>
    %93 = tpu.matmul %5, %60, %cst_88 {dimension_numbers = #tpu.dot_dimension_numbers<[1], [0], [0], [1], [0, 0, 1, 1], [], []>} : vector<4x64xbf16>, vector<64x16xbf16>, vector<4x16xf32> -> vector<4x16xf32>
    %cst_89 = arith.constant 2.000000e+01 : f32
    %94 = vector.broadcast %cst_89 : f32 to vector<4x16xf32>
    %95 = arith.minimumf %93, %94 : vector<4x16xf32>
    %96 = math.exp %95 : vector<4x16xf32>
    %cst_90 = arith.constant 2.000000e+00 : f32
    %97 = vector.broadcast %cst_90 : f32 to vector<4x16xf32>
    %98 = arith.addf %96, %97 : vector<4x16xf32>
    %99 = arith.mulf %96, %98 : vector<4x16xf32>
    %100 = arith.mulf %93, %99 : vector<4x16xf32>
    %cst_91 = arith.constant 2.000000e+00 : f32
    %101 = vector.broadcast %cst_91 : f32 to vector<4x16xf32>
    %102 = arith.addf %99, %101 : vector<4x16xf32>
    %103 = tpu.reciprocal %102 {approx = true} : vector<4x16xf32> -> vector<4x16xf32>
    %104 = arith.mulf %100, %103 : vector<4x16xf32>
    %105 = vector.broadcast %13 : vector<4x1xf32> to vector<4x16xf32>
    %106 = arith.mulf %104, %105 : vector<4x16xf32>
    %107 = vector.broadcast %21 : vector<4x1xf32> to vector<4x16xf32>
    %108 = arith.addf %106, %107 : vector<4x16xf32>
    %cst_92 = arith.constant dense<0.000000e+00> : vector<4x16xf32>
    %109 = tpu.matmul %7, %60, %cst_92 {dimension_numbers = #tpu.dot_dimension_numbers<[1], [0], [0], [1], [0, 0, 1, 1], [], []>} : vector<4x64xbf16>, vector<64x16xbf16>, vector<4x16xf32> -> vector<4x16xf32>
    %cst_93 = arith.constant 2.000000e+01 : f32
    %110 = vector.broadcast %cst_93 : f32 to vector<4x16xf32>
    %111 = arith.minimumf %109, %110 : vector<4x16xf32>
    %112 = math.exp %111 : vector<4x16xf32>
    %cst_94 = arith.constant 2.000000e+00 : f32
    %113 = vector.broadcast %cst_94 : f32 to vector<4x16xf32>
    %114 = arith.addf %112, %113 : vector<4x16xf32>
    %115 = arith.mulf %112, %114 : vector<4x16xf32>
    %116 = arith.mulf %109, %115 : vector<4x16xf32>
    %cst_95 = arith.constant 2.000000e+00 : f32
    %117 = vector.broadcast %cst_95 : f32 to vector<4x16xf32>
    %118 = arith.addf %115, %117 : vector<4x16xf32>
    %119 = tpu.reciprocal %118 {approx = true} : vector<4x16xf32> -> vector<4x16xf32>
    %120 = arith.mulf %116, %119 : vector<4x16xf32>
    %121 = vector.broadcast %15 : vector<4x1xf32> to vector<4x16xf32>
    %122 = arith.mulf %120, %121 : vector<4x16xf32>
    %123 = vector.broadcast %23 : vector<4x1xf32> to vector<4x16xf32>
    %124 = arith.addf %122, %123 : vector<4x16xf32>
    %125 = arith.truncf %124 : vector<4x16xf32> to vector<4x16xbf16>
    %cst_96 = arith.constant dense<0.000000e+00> : vector<64x16xf32>
    %126 = tpu.matmul %55, %125, %cst_96 {dimension_numbers = #tpu.dot_dimension_numbers<[1], [0], [0], [1], [0, 0, 1, 1], [], []>} : vector<64x4xbf16>, vector<4x16xbf16>, vector<64x16xf32> -> vector<64x16xf32>
    %127 = vector.extract_strided_slice %76 {offsets = [0, 0], sizes = [4, 15], strides = [1, 1]} : vector<4x16xf32> to vector<4x15xf32>
    %128 = tpu.concatenate %57, %127 in 1 : vector<4x1xf32>, vector<4x15xf32> -> vector<4x16xf32>
    %129 = vector.extract_strided_slice %76 {offsets = [0, 1], sizes = [4, 15], strides = [1, 1]} : vector<4x16xf32> to vector<4x15xf32>
    %130 = tpu.concatenate %129, %57 in 1 : vector<4x15xf32>, vector<4x1xf32> -> vector<4x16xf32>
    %131 = arith.truncf %128 : vector<4x16xf32> to vector<4x16xbf16>
    %cst_97 = arith.constant dense<0.000000e+00> : vector<4x16xf32>
    %132 = tpu.matmul %25, %131, %cst_97 {dimension_numbers = #tpu.dot_dimension_numbers<[1], [0], [0], [1], [0, 0, 1, 1], [], []>} : vector<4x4xbf16>, vector<4x16xbf16>, vector<4x16xf32> -> vector<4x16xf32>
    %133 = arith.truncf %76 : vector<4x16xf32> to vector<4x16xbf16>
    %cst_98 = arith.constant dense<0.000000e+00> : vector<4x16xf32>
    %134 = tpu.matmul %27, %133, %cst_98 {dimension_numbers = #tpu.dot_dimension_numbers<[1], [0], [0], [1], [0, 0, 1, 1], [], []>} : vector<4x4xbf16>, vector<4x16xbf16>, vector<4x16xf32> -> vector<4x16xf32>
    %135 = arith.addf %132, %134 : vector<4x16xf32>
    %136 = arith.truncf %130 : vector<4x16xf32> to vector<4x16xbf16>
    %cst_99 = arith.constant dense<0.000000e+00> : vector<4x16xf32>
    %137 = tpu.matmul %29, %136, %cst_99 {dimension_numbers = #tpu.dot_dimension_numbers<[1], [0], [0], [1], [0, 0, 1, 1], [], []>} : vector<4x4xbf16>, vector<4x16xbf16>, vector<4x16xf32> -> vector<4x16xf32>
    %138 = arith.addf %135, %137 : vector<4x16xf32>
    %139 = vector.broadcast %43 : vector<4x1xf32> to vector<4x16xf32>
    %140 = arith.addf %138, %139 : vector<4x16xf32>
    %cst_100 = arith.constant 2.000000e+01 : f32
    %141 = vector.broadcast %cst_100 : f32 to vector<4x16xf32>
    %142 = arith.minimumf %140, %141 : vector<4x16xf32>
    %143 = math.exp %142 : vector<4x16xf32>
    %cst_101 = arith.constant 2.000000e+00 : f32
    %144 = vector.broadcast %cst_101 : f32 to vector<4x16xf32>
    %145 = arith.addf %143, %144 : vector<4x16xf32>
    %146 = arith.mulf %143, %145 : vector<4x16xf32>
    %147 = arith.mulf %140, %146 : vector<4x16xf32>
    %cst_102 = arith.constant 2.000000e+00 : f32
    %148 = vector.broadcast %cst_102 : f32 to vector<4x16xf32>
    %149 = arith.addf %146, %148 : vector<4x16xf32>
    %150 = tpu.reciprocal %149 {approx = true} : vector<4x16xf32> -> vector<4x16xf32>
    %151 = arith.mulf %147, %150 : vector<4x16xf32>
    %152 = arith.truncf %151 : vector<4x16xf32> to vector<4x16xbf16>
    %cst_103 = arith.constant dense<0.000000e+00> : vector<64x16xf32>
    %153 = tpu.matmul %49, %152, %cst_103 {dimension_numbers = #tpu.dot_dimension_numbers<[1], [0], [0], [1], [0, 0, 1, 1], [], []>} : vector<64x4xbf16>, vector<4x16xbf16>, vector<64x16xf32> -> vector<64x16xf32>
    %154 = arith.addf %126, %153 : vector<64x16xf32>
    %155 = arith.addf %151, %92 : vector<4x16xf32>
    %156 = vector.extract_strided_slice %155 {offsets = [0, 0], sizes = [4, 15], strides = [1, 1]} : vector<4x16xf32> to vector<4x15xf32>
    %157 = tpu.concatenate %57, %156 in 1 : vector<4x1xf32>, vector<4x15xf32> -> vector<4x16xf32>
    %158 = vector.extract_strided_slice %155 {offsets = [0, 1], sizes = [4, 15], strides = [1, 1]} : vector<4x16xf32> to vector<4x15xf32>
    %159 = tpu.concatenate %158, %57 in 1 : vector<4x15xf32>, vector<4x1xf32> -> vector<4x16xf32>
    %160 = arith.truncf %157 : vector<4x16xf32> to vector<4x16xbf16>
    %cst_104 = arith.constant dense<0.000000e+00> : vector<4x16xf32>
    %161 = tpu.matmul %31, %160, %cst_104 {dimension_numbers = #tpu.dot_dimension_numbers<[1], [0], [0], [1], [0, 0, 1, 1], [], []>} : vector<4x4xbf16>, vector<4x16xbf16>, vector<4x16xf32> -> vector<4x16xf32>
    %162 = arith.truncf %155 : vector<4x16xf32> to vector<4x16xbf16>
    %cst_105 = arith.constant dense<0.000000e+00> : vector<4x16xf32>
    %163 = tpu.matmul %33, %162, %cst_105 {dimension_numbers = #tpu.dot_dimension_numbers<[1], [0], [0], [1], [0, 0, 1, 1], [], []>} : vector<4x4xbf16>, vector<4x16xbf16>, vector<4x16xf32> -> vector<4x16xf32>
    %164 = arith.addf %161, %163 : vector<4x16xf32>
    %165 = arith.truncf %159 : vector<4x16xf32> to vector<4x16xbf16>
    %cst_106 = arith.constant dense<0.000000e+00> : vector<4x16xf32>
    %166 = tpu.matmul %35, %165, %cst_106 {dimension_numbers = #tpu.dot_dimension_numbers<[1], [0], [0], [1], [0, 0, 1, 1], [], []>} : vector<4x4xbf16>, vector<4x16xbf16>, vector<4x16xf32> -> vector<4x16xf32>
    %167 = arith.addf %164, %166 : vector<4x16xf32>
    %168 = vector.broadcast %45 : vector<4x1xf32> to vector<4x16xf32>
    %169 = arith.addf %167, %168 : vector<4x16xf32>
    %cst_107 = arith.constant 2.000000e+01 : f32
    %170 = vector.broadcast %cst_107 : f32 to vector<4x16xf32>
    %171 = arith.minimumf %169, %170 : vector<4x16xf32>
    %172 = math.exp %171 : vector<4x16xf32>
    %cst_108 = arith.constant 2.000000e+00 : f32
    %173 = vector.broadcast %cst_108 : f32 to vector<4x16xf32>
    %174 = arith.addf %172, %173 : vector<4x16xf32>
    %175 = arith.mulf %172, %174 : vector<4x16xf32>
    %176 = arith.mulf %169, %175 : vector<4x16xf32>
    %cst_109 = arith.constant 2.000000e+00 : f32
    %177 = vector.broadcast %cst_109 : f32 to vector<4x16xf32>
    %178 = arith.addf %175, %177 : vector<4x16xf32>
    %179 = tpu.reciprocal %178 {approx = true} : vector<4x16xf32> -> vector<4x16xf32>
    %180 = arith.mulf %176, %179 : vector<4x16xf32>
    %181 = arith.truncf %180 : vector<4x16xf32> to vector<4x16xbf16>
    %cst_110 = arith.constant dense<0.000000e+00> : vector<64x16xf32>
    %182 = tpu.matmul %51, %181, %cst_110 {dimension_numbers = #tpu.dot_dimension_numbers<[1], [0], [0], [1], [0, 0, 1, 1], [], []>} : vector<64x4xbf16>, vector<4x16xbf16>, vector<64x16xf32> -> vector<64x16xf32>
    %183 = arith.addf %154, %182 : vector<64x16xf32>
    %184 = arith.addf %180, %108 : vector<4x16xf32>
    %185 = vector.extract_strided_slice %184 {offsets = [0, 0], sizes = [4, 15], strides = [1, 1]} : vector<4x16xf32> to vector<4x15xf32>
    %186 = tpu.concatenate %57, %185 in 1 : vector<4x1xf32>, vector<4x15xf32> -> vector<4x16xf32>
    %187 = vector.extract_strided_slice %184 {offsets = [0, 1], sizes = [4, 15], strides = [1, 1]} : vector<4x16xf32> to vector<4x15xf32>
    %188 = tpu.concatenate %187, %57 in 1 : vector<4x15xf32>, vector<4x1xf32> -> vector<4x16xf32>
    %189 = arith.truncf %186 : vector<4x16xf32> to vector<4x16xbf16>
    %cst_111 = arith.constant dense<0.000000e+00> : vector<4x16xf32>
    %190 = tpu.matmul %37, %189, %cst_111 {dimension_numbers = #tpu.dot_dimension_numbers<[1], [0], [0], [1], [0, 0, 1, 1], [], []>} : vector<4x4xbf16>, vector<4x16xbf16>, vector<4x16xf32> -> vector<4x16xf32>
    %191 = arith.truncf %184 : vector<4x16xf32> to vector<4x16xbf16>
    %cst_112 = arith.constant dense<0.000000e+00> : vector<4x16xf32>
    %192 = tpu.matmul %39, %191, %cst_112 {dimension_numbers = #tpu.dot_dimension_numbers<[1], [0], [0], [1], [0, 0, 1, 1], [], []>} : vector<4x4xbf16>, vector<4x16xbf16>, vector<4x16xf32> -> vector<4x16xf32>
    %193 = arith.addf %190, %192 : vector<4x16xf32>
    %194 = arith.truncf %188 : vector<4x16xf32> to vector<4x16xbf16>
    %cst_113 = arith.constant dense<0.000000e+00> : vector<4x16xf32>
    %195 = tpu.matmul %41, %194, %cst_113 {dimension_numbers = #tpu.dot_dimension_numbers<[1], [0], [0], [1], [0, 0, 1, 1], [], []>} : vector<4x4xbf16>, vector<4x16xbf16>, vector<4x16xf32> -> vector<4x16xf32>
    %196 = arith.addf %193, %195 : vector<4x16xf32>
    %197 = vector.broadcast %47 : vector<4x1xf32> to vector<4x16xf32>
    %198 = arith.addf %196, %197 : vector<4x16xf32>
    %cst_114 = arith.constant 2.000000e+01 : f32
    %199 = vector.broadcast %cst_114 : f32 to vector<4x16xf32>
    %200 = arith.minimumf %198, %199 : vector<4x16xf32>
    %201 = math.exp %200 : vector<4x16xf32>
    %cst_115 = arith.constant 2.000000e+00 : f32
    %202 = vector.broadcast %cst_115 : f32 to vector<4x16xf32>
    %203 = arith.addf %201, %202 : vector<4x16xf32>
    %204 = arith.mulf %201, %203 : vector<4x16xf32>
    %205 = arith.mulf %198, %204 : vector<4x16xf32>
    %cst_116 = arith.constant 2.000000e+00 : f32
    %206 = vector.broadcast %cst_116 : f32 to vector<4x16xf32>
    %207 = arith.addf %204, %206 : vector<4x16xf32>
    %208 = tpu.reciprocal %207 {approx = true} : vector<4x16xf32> -> vector<4x16xf32>
    %209 = arith.mulf %205, %208 : vector<4x16xf32>
    %210 = arith.truncf %209 : vector<4x16xf32> to vector<4x16xbf16>
    %cst_117 = arith.constant dense<0.000000e+00> : vector<64x16xf32>
    %211 = tpu.matmul %53, %210, %cst_117 {dimension_numbers = #tpu.dot_dimension_numbers<[1], [0], [0], [1], [0, 0, 1, 1], [], []>} : vector<64x4xbf16>, vector<4x16xbf16>, vector<64x16xf32> -> vector<64x16xf32>
    %212 = arith.addf %183, %211 : vector<64x16xf32>
    %213 = vector.broadcast %56 : vector<64x1xf32> to vector<64x16xf32>
    %214 = arith.addf %212, %213 : vector<64x16xf32>
    %215 = arith.addf %214, %59 : vector<64x16xf32>
    %cst_118 = arith.constant 2.000000e+01 : f32
    %216 = vector.broadcast %cst_118 : f32 to vector<64x16xf32>
    %217 = arith.minimumf %215, %216 : vector<64x16xf32>
    %218 = math.exp %217 : vector<64x16xf32>
    %cst_119 = arith.constant 2.000000e+00 : f32
    %219 = vector.broadcast %cst_119 : f32 to vector<64x16xf32>
    %220 = arith.addf %218, %219 : vector<64x16xf32>
    %221 = arith.mulf %218, %220 : vector<64x16xf32>
    %222 = arith.mulf %215, %221 : vector<64x16xf32>
    %cst_120 = arith.constant 2.000000e+00 : f32
    %223 = vector.broadcast %cst_120 : f32 to vector<64x16xf32>
    %224 = arith.addf %221, %223 : vector<64x16xf32>
    %225 = tpu.reciprocal %224 {approx = true} : vector<64x16xf32> -> vector<64x16xf32>
    %226 = arith.mulf %222, %225 : vector<64x16xf32>
    %227 = arith.truncf %226 : vector<64x16xf32> to vector<64x16xbf16>
    %c0_121 = arith.constant 0 : index
    %c0_122 = arith.constant 0 : index
    %c0_123 = arith.constant 0 : index
    %228 = vector.load %arg9[%c0_121, %c0_122, %c0_123] : memref<1x64x16xbf16, #tpu.memory_space<vmem>>, vector<1x64x16xbf16>
    %229 = vector.shape_cast %228 : vector<1x64x16xbf16> to vector<64x16xbf16>
    %230 = vector.shape_cast %227 : vector<64x16xbf16> to vector<1x64x16xbf16>
    tpu.vector_store %arg9[%c0_121, %c0_122, %c0_123], %230 {strides = array<i32>} : memref<1x64x16xbf16, #tpu.memory_space<vmem>>, vector<1x64x16xbf16>,
    return
  }
  func.func @transform_0(%arg0: i32) -> (i32, i32, i32) {
    %c0_i32 = arith.constant 0 : i32
    %c0_i32_0 = arith.constant 0 : i32
    %c0_i32_1 = arith.constant 0 : i32
    return %arg0, %c0_i32, %c0_i32_0 : i32, i32, i32
  }
  func.func @transform_1(%arg0: i32) -> (i32, i32, i32) {
    %c0_i32 = arith.constant 0 : i32
    %c0_i32_0 = arith.constant 0 : i32
    %c0_i32_1 = arith.constant 0 : i32
    %c0_i32_2 = arith.constant 0 : i32
    return %c0_i32, %c0_i32_0, %c0_i32_1 : i32, i32, i32
  }
  func.func @transform_2(%arg0: i32) -> (i32, i32, i32) {
    %c0_i32 = arith.constant 0 : i32
    %c0_i32_0 = arith.constant 0 : i32
    %c0_i32_1 = arith.constant 0 : i32
    %c0_i32_2 = arith.constant 0 : i32
    return %c0_i32, %c0_i32_0, %c0_i32_1 : i32, i32, i32
  }
  func.func @transform_3(%arg0: i32) -> (i32, i32, i32) {
    %c0_i32 = arith.constant 0 : i32
    %c0_i32_0 = arith.constant 0 : i32
    %c0_i32_1 = arith.constant 0 : i32
    %c0_i32_2 = arith.constant 0 : i32
    return %c0_i32, %c0_i32_0, %c0_i32_1 : i32, i32, i32
  }
  func.func @transform_4(%arg0: i32) -> (i32, i32, i32) {
    %c0_i32 = arith.constant 0 : i32
    %c0_i32_0 = arith.constant 0 : i32
    %c0_i32_1 = arith.constant 0 : i32
    %c0_i32_2 = arith.constant 0 : i32
    return %c0_i32, %c0_i32_0, %c0_i32_1 : i32, i32, i32
  }
  func.func @transform_5(%arg0: i32) -> (i32, i32, i32) {
    %c0_i32 = arith.constant 0 : i32
    %c0_i32_0 = arith.constant 0 : i32
    %c0_i32_1 = arith.constant 0 : i32
    %c0_i32_2 = arith.constant 0 : i32
    return %c0_i32, %c0_i32_0, %c0_i32_1 : i32, i32, i32
  }
  func.func @transform_6(%arg0: i32) -> (i32, i32, i32) {
    %c0_i32 = arith.constant 0 : i32
    %c0_i32_0 = arith.constant 0 : i32
    %c0_i32_1 = arith.constant 0 : i32
    %c0_i32_2 = arith.constant 0 : i32
    return %c0_i32, %c0_i32_0, %c0_i32_1 : i32, i32, i32
  }
  func.func @transform_7(%arg0: i32) -> (i32, i32) {
    %c0_i32 = arith.constant 0 : i32
    %c0_i32_0 = arith.constant 0 : i32
    %c0_i32_1 = arith.constant 0 : i32
    return %c0_i32, %c0_i32_0 : i32, i32
  }
  func.func @transform_8(%arg0: i32) -> (i32, i32, i32) {
    %c0_i32 = arith.constant 0 : i32
    %c0_i32_0 = arith.constant 0 : i32
    %c0_i32_1 = arith.constant 0 : i32
    return %arg0, %c0_i32, %c0_i32_0 : i32, i32, i32
  }
}

</mosaic_0001>

<llo_original>
// kernel: tpu_custom_call.1
$region0: #{tpu_custom_call.1}
  #allocation0 [shape = 'u32[]', space=smem, size = 0x4, offset = 0x4, fixed_abs, tag = 'smem constant byte address 0x4 - core index']
  #allocation1 [shape = 'u32[144,128]{1,0:T(1,128)}', space=vmem, size = 0x12000, scoped, tag = 'internal scratch']
  %s0 = inlined_call_operand.vmem [shape: f32[2,64,16], index: 0, kind: input, shape index: {}]
  %s1 = inlined_call_operand.vmem [shape: bf16[4,4,64], index: 1, kind: input, shape index: {}]
  %s2 = inlined_call_operand.vmem [shape: f32[4,4,1], index: 2, kind: input, shape index: {}]
  %s3 = inlined_call_operand.vmem [shape: f32[4,4,1], index: 3, kind: input, shape index: {}]
  %s4 = inlined_call_operand.vmem [shape: bf16[9,4,4], index: 4, kind: input, shape index: {}]
  %s5 = inlined_call_operand.vmem [shape: f32[3,4,1], index: 5, kind: input, shape index: {}]
  %s6 = inlined_call_operand.vmem [shape: bf16[4,64,4], index: 6, kind: input, shape index: {}]
  %s7 = inlined_call_operand.vmem [shape: f32[64,1], index: 7, kind: input, shape index: {}]
  %s8 = inlined_call_operand.vmem [shape: bf16[2,64,16], index: 8, kind: output, shape index: {}]
  %s9 = sld [smem:[#allocation0]]
  $region65: #{tpu_custom_call.1} parent=0
    _
  %s11 = ssub.s32 1, %s9
  %s12 = scalar_select 0, %s11, %s9
  loop: start=0, step=1, limit=4
  $region2: #{tpu_custom_call.1} parent=0 // loop_pre_header
    _
  $region3: #{tpu_custom_call.1} parent=0 // loop_header
    %s14 = sphi 0, %s18
    %p15 = scmp.ge.s32.totalorder %s14, 4
    %s24 = sphi 0, %s26
    %s27 = sphi 0, %s24
    %s28 = sphi 0, %s27
    %s44 = sphi 0, %s28
    %s48 = sphi 0, %s48
    %s50 = sphi 0, %s48
    %s51 = sphi 0, %s50
    %s65 = sphi 0, %s51
    %s69 = sphi 0, %s69
    %s71 = sphi 0, %s69
    %s72 = sphi 0, %s71
    %s86 = sphi 0, %s72
    %s90 = sphi 0, %s90
    %s92 = sphi 0, %s90
    %s93 = sphi 0, %s92
    %s107 = sphi 0, %s93
    %s111 = sphi 0, %s111
    %s113 = sphi 0, %s111
    %s114 = sphi 0, %s113
    %s128 = sphi 0, %s114
    %s132 = sphi 0, %s132
    %s134 = sphi 0, %s132
    %s135 = sphi 0, %s134
    %s149 = sphi 0, %s135
    %s153 = sphi 0, %s153
    %s155 = sphi 0, %s153
    %s156 = sphi 0, %s155
    %s170 = sphi 0, %s156
    %s174 = sphi 0, %s174
    %s176 = sphi 0, %s174
    %s177 = sphi 0, %s176
    %s191 = sphi 0, %s177
    %s197 = sphi 0, %s199
    %s200 = sphi 0, %s197
    %s201 = sphi 0, %s200
    %s217 = sphi 0, %s201
  $region4: #{tpu_custom_call.1} parent=0 // loop_header_branch
    %17 = sbr.rel (%p15) target = $region8
  $region5: #{tpu_custom_call.1} parent=0 // loop_body
    %s19 = ssub.s32 %s14, 1
    %s20 = ssub.s32 %s14, 2
    %s21 = sadd.s32 %s14, 1
    %s22 = ssub.s32 %s14, %s21
    %p23 = scmp.eq.s32.totalorder %s22, 0
    %s25 = sadd.s32 %s24, 1
    %s26 = scalar_select %p23, %s24, %s25
    %p29 = pneg %p23
    %p30 = scmp.eq.s32.totalorder %s14, 1
    %p31 = por %p29, %p30
    %p32 = scmp.ne.s32.totalorder %s24, %s27
    %p33 = scmp.eq.s32.totalorder %s14, 0
    %p34 = por %p32, %p33
    %p35 = scmp.ne.s32.totalorder %s24, %s27
    %p36 = scmp.eq.s32.totalorder %s19, 1
    %p37 = por %p35, %p36
    %p38 = scmp.ne.s32.totalorder %s27, %s28
    %p39 = scmp.eq.s32.totalorder %s19, 0
    %p40 = por %p38, %p39
    %p41 = scmp.ne.s32.totalorder %s27, %s28
    %p42 = scmp.eq.s32.totalorder %s20, 1
    %p43 = por %p41, %p42
    %p45 = scmp.ne.s32.totalorder %s28, %s44
    %p46 = scmp.eq.s32.totalorder %s20, 0
    %p47 = por %p45, %p46
    %s49 = sadd.s32 %s48, 1
    %p52 = scmp.eq.s32.totalorder %s14, 1
    %p53 = scmp.ne.s32.totalorder %s48, %s50
    %p54 = scmp.eq.s32.totalorder %s14, 0
    %p55 = por %p53, %p54
    %p56 = scmp.ne.s32.totalorder %s48, %s50
    %p57 = scmp.eq.s32.totalorder %s19, 1
    %p58 = por %p56, %p57
    %p59 = scmp.ne.s32.totalorder %s50, %s51
    %p60 = scmp.eq.s32.totalorder %s19, 0
    %p61 = por %p59, %p60
    %p62 = scmp.ne.s32.totalorder %s50, %s51
    %p63 = scmp.eq.s32.totalorder %s20, 1
    %p64 = por %p62, %p63
    %p66 = scmp.ne.s32.totalorder %s51, %s65
    %p67 = scmp.eq.s32.totalorder %s20, 0
    %p68 = por %p66, %p67
    %s70 = sadd.s32 %s69, 1
    %p73 = scmp.eq.s32.totalorder %s14, 1
    %p74 = scmp.ne.s32.totalorder %s69, %s71
    %p75 = scmp.eq.s32.totalorder %s14, 0
    %p76 = por %p74, %p75
    %p77 = scmp.ne.s32.totalorder %s69, %s71
    %p78 = scmp.eq.s32.totalorder %s19, 1
    %p79 = por %p77, %p78
    %p80 = scmp.ne.s32.totalorder %s71, %s72
    %p81 = scmp.eq.s32.totalorder %s19, 0
    %p82 = por %p80, %p81
    %p83 = scmp.ne.s32.totalorder %s71, %s72
    %p84 = scmp.eq.s32.totalorder %s20, 1
    %p85 = por %p83, %p84
    %p87 = scmp.ne.s32.totalorder %s72, %s86
    %p88 = scmp.eq.s32.totalorder %s20, 0
    %p89 = por %p87, %p88
    %s91 = sadd.s32 %s90, 1
    %p94 = scmp.eq.s32.totalorder %s14, 1
    %p95 = scmp.ne.s32.totalorder %s90, %s92
    %p96 = scmp.eq.s32.totalorder %s14, 0
    %p97 = por %p95, %p96
    %p98 = scmp.ne.s32.totalorder %s90, %s92
    %p99 = scmp.eq.s32.totalorder %s19, 1
    %p100 = por %p98, %p99
    %p101 = scmp.ne.s32.totalorder %s92, %s93
    %p102 = scmp.eq.s32.totalorder %s19, 0
    %p103 = por %p101, %p102
    %p104 = scmp.ne.s32.totalorder %s92, %s93
    %p105 = scmp.eq.s32.totalorder %s20, 1
    %p106 = por %p104, %p105
    %p108 = scmp.ne.s32.totalorder %s93, %s107
    %p109 = scmp.eq.s32.totalorder %s20, 0
    %p110 = por %p108, %p109
    %s112 = sadd.s32 %s111, 1
    %p115 = scmp.eq.s32.totalorder %s14, 1
    %p116 = scmp.ne.s32.totalorder %s111, %s113
    %p117 = scmp.eq.s32.totalorder %s14, 0
    %p118 = por %p116, %p117
    %p119 = scmp.ne.s32.totalorder %s111, %s113
    %p120 = scmp.eq.s32.totalorder %s19, 1
    %p121 = por %p119, %p120
    %p122 = scmp.ne.s32.totalorder %s113, %s114
    %p123 = scmp.eq.s32.totalorder %s19, 0
    %p124 = por %p122, %p123
    %p125 = scmp.ne.s32.totalorder %s113, %s114
    %p126 = scmp.eq.s32.totalorder %s20, 1
    %p127 = por %p125, %p126
    %p129 = scmp.ne.s32.totalorder %s114, %s128
    %p130 = scmp.eq.s32.totalorder %s20, 0
    %p131 = por %p129, %p130
    %s133 = sadd.s32 %s132, 1
    %p136 = scmp.eq.s32.totalorder %s14, 1
    %p137 = scmp.ne.s32.totalorder %s132, %s134
    %p138 = scmp.eq.s32.totalorder %s14, 0
    %p139 = por %p137, %p138
    %p140 = scmp.ne.s32.totalorder %s132, %s134
    %p141 = scmp.eq.s32.totalorder %s19, 1
    %p142 = por %p140, %p141
    %p143 = scmp.ne.s32.totalorder %s134, %s135
    %p144 = scmp.eq.s32.totalorder %s19, 0
    %p145 = por %p143, %p144
    %p146 = scmp.ne.s32.totalorder %s134, %s135
    %p147 = scmp.eq.s32.totalorder %s20, 1
    %p148 = por %p146, %p147
    %p150 = scmp.ne.s32.totalorder %s135, %s149
    %p151 = scmp.eq.s32.totalorder %s20, 0
    %p152 = por %p150, %p151
    %s154 = sadd.s32 %s153, 1
    %p157 = scmp.eq.s32.totalorder %s14, 1
    %p158 = scmp.ne.s32.totalorder %s153, %s155
    %p159 = scmp.eq.s32.totalorder %s14, 0
    %p160 = por %p158, %p159
    %p161 = scmp.ne.s32.totalorder %s153, %s155
    %p162 = scmp.eq.s32.totalorder %s19, 1
    %p163 = por %p161, %p162
    %p164 = scmp.ne.s32.totalorder %s155, %s156
    %p165 = scmp.eq.s32.totalorder %s19, 0
    %p166 = por %p164, %p165
    %p167 = scmp.ne.s32.totalorder %s155, %s156
    %p168 = scmp.eq.s32.totalorder %s20, 1
    %p169 = por %p167, %p168
    %p171 = scmp.ne.s32.totalorder %s156, %s170
    %p172 = scmp.eq.s32.totalorder %s20, 0
    %p173 = por %p171, %p172
    %s175 = sadd.s32 %s174, 1
    %p178 = scmp.eq.s32.totalorder %s14, 1
    %p179 = scmp.ne.s32.totalorder %s174, %s176
    %p180 = scmp.eq.s32.totalorder %s14, 0
    %p181 = por %p179, %p180
    %p182 = scmp.ne.s32.totalorder %s174, %s176
    %p183 = scmp.eq.s32.totalorder %s19, 1
    %p184 = por %p182, %p183
    %p185 = scmp.ne.s32.totalorder %s176, %s177
    %p186 = scmp.eq.s32.totalorder %s19, 0
    %p187 = por %p185, %p186
    %p188 = scmp.ne.s32.totalorder %s176, %s177
    %p189 = scmp.eq.s32.totalorder %s20, 1
    %p190 = por %p188, %p189
    %p192 = scmp.ne.s32.totalorder %s177, %s191
    %p193 = scmp.eq.s32.totalorder %s20, 0
    %p194 = por %p192, %p193
    %s195 = ssub.s32 %s14, %s21
    %p196 = scmp.eq.s32.totalorder %s195, 0
    %s198 = sadd.s32 %s197, 1
    %s199 = scalar_select %p196, %s197, %s198
    %p202 = pneg %p196
    %p203 = scmp.eq.s32.totalorder %s14, 1
    %p204 = por %p202, %p203
    %p205 = scmp.ne.s32.totalorder %s197, %s200
    %p206 = scmp.eq.s32.totalorder %s14, 0
    %p207 = por %p205, %p206
    %p208 = scmp.ne.s32.totalorder %s197, %s200
    %p209 = scmp.eq.s32.totalorder %s19, 1
    %p210 = por %p208, %p209
    %p211 = scmp.ne.s32.totalorder %s200, %s201
    %p212 = scmp.eq.s32.totalorder %s19, 0
    %p213 = por %p211, %p212
    %p214 = scmp.ne.s32.totalorder %s200, %s201
    %p215 = scmp.eq.s32.totalorder %s20, 1
    %p216 = por %p214, %p215
    %p218 = scmp.ne.s32.totalorder %s201, %s217
    %p219 = scmp.eq.s32.totalorder %s20, 0
    %p220 = por %p218, %p219
    %p221 = scmp.le.s32.totalorder 1, %s14
    %p222 = scmp.lt.s32.totalorder %s14, 3
    %p223 = pnand %p221, %p222
    %p224 = pneg %p223
    // Predicated region
    $region9: #{tpu_custom_call.1} parent=5 // pred_check
      _
    $region10: #{tpu_custom_call.1} parent=5 // pred_check_branch
      %226 = sbr.rel (%p223) target = $region12
    $region11: #{tpu_custom_call.1} parent=5 // pred_region
      %s227 = ssub.s32 %s14, 1
      // Predicated region
      $region13: #{tpu_custom_call.1} parent=11 // pred_check
        %p228 = pneg %p61
      $region14: #{tpu_custom_call.1} parent=11 // pred_check_branch
        %230 = sbr.rel (%p228) target = $region16
      $region15: #{tpu_custom_call.1} parent=11 // pred_region
        _
      $region16: #{tpu_custom_call.1} parent=11 // pred_fallthru
        _
      // Predicated region
      $region17: #{tpu_custom_call.1} parent=11 // pred_check
        %p231 = pneg %p82
      $region18: #{tpu_custom_call.1} parent=11 // pred_check_branch
        %233 = sbr.rel (%p231) target = $region20
      $region19: #{tpu_custom_call.1} parent=11 // pred_region
        _
      $region20: #{tpu_custom_call.1} parent=11 // pred_fallthru
        _
      // Predicated region
      $region21: #{tpu_custom_call.1} parent=11 // pred_check
        %p234 = pneg %p103
      $region22: #{tpu_custom_call.1} parent=11 // pred_check_branch
        %236 = sbr.rel (%p234) target = $region24
      $region23: #{tpu_custom_call.1} parent=11 // pred_region
        _
      $region24: #{tpu_custom_call.1} parent=11 // pred_fallthru
        _
      // Predicated region
      $region25: #{tpu_custom_call.1} parent=11 // pred_check
        %p237 = pneg %p124
      $region26: #{tpu_custom_call.1} parent=11 // pred_check_branch
        %239 = sbr.rel (%p237) target = $region28
      $region27: #{tpu_custom_call.1} parent=11 // pred_region
        _
      $region28: #{tpu_custom_call.1} parent=11 // pred_fallthru
        _
      // Predicated region
      $region29: #{tpu_custom_call.1} parent=11 // pred_check
        %p240 = pneg %p145
      $region30: #{tpu_custom_call.1} parent=11 // pred_check_branch
        %242 = sbr.rel (%p240) target = $region32
      $region31: #{tpu_custom_call.1} parent=11 // pred_region
        _
      $region32: #{tpu_custom_call.1} parent=11 // pred_fallthru
        _
      // Predicated region
      $region33: #{tpu_custom_call.1} parent=11 // pred_check
        %p243 = pneg %p166
      $region34: #{tpu_custom_call.1} parent=11 // pred_check_branch
        %245 = sbr.rel (%p243) target = $region36
      $region35: #{tpu_custom_call.1} parent=11 // pred_region
        _
      $region36: #{tpu_custom_call.1} parent=11 // pred_fallthru
        _
      // Predicated region
      $region37: #{tpu_custom_call.1} parent=11 // pred_check
        %p246 = pneg %p187
      $region38: #{tpu_custom_call.1} parent=11 // pred_check_branch
        %248 = sbr.rel (%p246) target = $region40
      $region39: #{tpu_custom_call.1} parent=11 // pred_region
        _
      $region40: #{tpu_custom_call.1} parent=11 // pred_fallthru
        _
    $region12: #{tpu_custom_call.1} parent=5 // pred_fallthru
      _
    %p249 = scmp.lt.s32.totalorder %s14, 2
    // Predicated region
    $region41: #{tpu_custom_call.1} parent=5 // pred_check
      %p250 = pneg %p249
    $region42: #{tpu_custom_call.1} parent=5 // pred_check_branch
      %252 = sbr.rel (%p250) target = $region44
    $region43: #{tpu_custom_call.1} parent=5 // pred_region
      // Predicated region
      $region45: #{tpu_custom_call.1} parent=43 // pred_check
        %p253 = pneg %p34
      $region46: #{tpu_custom_call.1} parent=43 // pred_check_branch
        %255 = sbr.rel (%p253) target = $region48
      $region47: #{tpu_custom_call.1} parent=43 // pred_region
        %p256 = scmp.lt.s32.totalorder %s14, 1
        %s257 = scalar_select %p256, %s14, 1
        %s258 = smul.addr %s257, 8
        %s259 = smul.addr %s258, 8
        %s260 = scalar_lea.vmem %s0, %s259
      $region48: #{tpu_custom_call.1} parent=43 // pred_fallthru
        _
    $region44: #{tpu_custom_call.1} parent=5 // pred_fallthru
      _
    %p261 = scmp.le.s32.totalorder 1, %s14
    %p262 = scmp.lt.s32.totalorder %s14, 3
    %p263 = pnand %p261, %p262
    %p264 = pneg %p263
    // Predicated region
    $region49: #{tpu_custom_call.1} parent=5 // pred_check
      _
    $region50: #{tpu_custom_call.1} parent=5 // pred_check_branch
      %266 = sbr.rel (%p263) target = $region52
    $region51: #{tpu_custom_call.1} parent=5 // pred_region
      %s267 = ssub.s32 %s14, 1
      %p268 = scmp.lt.s32.totalorder %s19, 1
      %s269 = scalar_select %p268, %s19, 1
      %s270 = smul.addr %s269, 8
      %s271 = smul.addr %s270, 8
      %s272 = scalar_lea.vmem %s0, %s271
      %p273 = pneg %p40
      %p274 = pneg %p37
      %p275 = pneg %p61
      %p276 = pneg %p58
      %p277 = pneg %p82
      %p278 = pneg %p79
      %p279 = pneg %p103
      %p280 = pneg %p100
      %p281 = pneg %p124
      %p282 = pneg %p121
      %p283 = pneg %p145
      %p284 = pneg %p142
      %p285 = pneg %p166
      %p286 = pneg %p163
      %p287 = pneg %p187
      %p288 = pneg %p184
      %p289 = pneg %p213
      %p290 = pneg %p210
      %p291 = scmp.lt.s32.totalorder %s19, 1
      %s292 = scalar_select %p291, %s19, 1
      %s293 = smul.addr %s292, 8
      %s294 = smul.addr %s293, 4
      %s295 = scalar_lea.vmem %s8, %s294
      %p296 = scmp.lt.s32.totalorder %s19, 1
      %s297 = scalar_select %p296, %s19, 1
      %s298 = smul.addr %s297, 8
      %s299 = smul.addr %s298, 8
      %s300 = scalar_lea.vmem %s0, %s299
      %p301 = scmp.lt.s32.totalorder %s19, 1
      %s302 = scalar_select %p301, %s19, 1
      %s303 = smul.addr %s302, 8
      %s304 = smul.addr %s303, 4
      %s305 = scalar_lea.vmem %s8, %s304
      %v307 = vld [vmem:[%s1] sm:$0x3]
      %s308 = scalar_lea.vmem %s1, 2
      %v309 = vld [vmem:[%s308] sm:$0x3]
      %s310 = scalar_lea.vmem %s1, 4
      %v311 = vld [vmem:[%s310] sm:$0x3]
      %s312 = scalar_lea.vmem %s1, 6
      %v313 = vld [vmem:[%s312] sm:$0x3]
      %v314 = vld [vmem:[%s2] sm:$0xf]
      %s315 = scalar_lea.vmem %s2, 4
      %v316 = vld [vmem:[%s315] sm:$0xf]
      %s317 = scalar_lea.vmem %s2, 8
      %v318 = vld [vmem:[%s317] sm:$0xf]
      %s319 = scalar_lea.vmem %s2, 12
      %v320 = vld [vmem:[%s319] sm:$0xf]
      %v321 = vld [vmem:[%s3] sm:$0xf]
      %s322 = scalar_lea.vmem %s3, 4
      %v323 = vld [vmem:[%s322] sm:$0xf]
      %s324 = scalar_lea.vmem %s3, 8
      %v325 = vld [vmem:[%s324] sm:$0xf]
      %s326 = scalar_lea.vmem %s3, 12
      %v327 = vld [vmem:[%s326] sm:$0xf]
      %v328 = vld [vmem:[%s4] sm:$0x3]
      %s329 = scalar_lea.vmem %s4, 2
      %v330 = vld [vmem:[%s329] sm:$0x3]
      %s331 = scalar_lea.vmem %s4, 4
      %v332 = vld [vmem:[%s331] sm:$0x3]
      %s333 = scalar_lea.vmem %s4, 6
      %v334 = vld [vmem:[%s333] sm:$0x3]
      %s335 = scalar_lea.vmem %s4, 8
      %v336 = vld [vmem:[%s335] sm:$0x3]
      %s337 = scalar_lea.vmem %s4, 10
      %v338 = vld [vmem:[%s337] sm:$0x3]
      %s339 = scalar_lea.vmem %s4, 12
      %v340 = vld [vmem:[%s339] sm:$0x3]
      %s341 = scalar_lea.vmem %s4, 14
      %v342 = vld [vmem:[%s341] sm:$0x3]
      %s343 = scalar_lea.vmem %s4, 16
      %v344 = vld [vmem:[%s343] sm:$0x3]
      %v345 = vld [vmem:[%s5] sm:$0xf]
      %s346 = scalar_lea.vmem %s5, 4
      %v347 = vld [vmem:[%s346] sm:$0xf]
      %s348 = scalar_lea.vmem %s5, 8
      %v349 = vld [vmem:[%s348] sm:$0xf]
      %v350 = vld [vmem:[%s6] sm:$0xf]
      %v351 = vld [vmem:[%s6 + $0x4] sm:$0xf]
      %v352 = vld [vmem:[%s6 + $0x8] sm:$0xf]
      %v353 = vld [vmem:[%s6 + $0xc] sm:$0xf]
      %v354 = vld [vmem:[%s6 + $0x10] sm:$0xf]
      %v355 = vld [vmem:[%s6 + $0x14] sm:$0xf]
      %v356 = vld [vmem:[%s6 + $0x18] sm:$0xf]
      %v357 = vld [vmem:[%s6 + $0x1c] sm:$0xf]
      %s358 = scalar_lea.vmem %s6, 32
      %v359 = vld [vmem:[%s358] sm:$0xf]
      %v360 = vld [vmem:[%s358 + $0x4] sm:$0xf]
      %v361 = vld [vmem:[%s358 + $0x8] sm:$0xf]
      %v362 = vld [vmem:[%s358 + $0xc] sm:$0xf]
      %v363 = vld [vmem:[%s358 + $0x10] sm:$0xf]
      %v364 = vld [vmem:[%s358 + $0x14] sm:$0xf]
      %v365 = vld [vmem:[%s358 + $0x18] sm:$0xf]
      %v366 = vld [vmem:[%s358 + $0x1c] sm:$0xf]
      %s367 = scalar_lea.vmem %s6, 64
      %v368 = vld [vmem:[%s367] sm:$0xf]
      %v369 = vld [vmem:[%s367 + $0x4] sm:$0xf]
      %v370 = vld [vmem:[%s367 + $0x8] sm:$0xf]
      %v371 = vld [vmem:[%s367 + $0xc] sm:$0xf]
      %v372 = vld [vmem:[%s367 + $0x10] sm:$0xf]
      %v373 = vld [vmem:[%s367 + $0x14] sm:$0xf]
      %v374 = vld [vmem:[%s367 + $0x18] sm:$0xf]
      %v375 = vld [vmem:[%s367 + $0x1c] sm:$0xf]
      %s376 = scalar_lea.vmem %s6, 96
      %v377 = vld [vmem:[%s376] sm:$0xf]
      %v378 = vld [vmem:[%s376 + $0x4] sm:$0xf]
      %v379 = vld [vmem:[%s376 + $0x8] sm:$0xf]
      %v380 = vld [vmem:[%s376 + $0xc] sm:$0xf]
      %v381 = vld [vmem:[%s376 + $0x10] sm:$0xf]
      %v382 = vld [vmem:[%s376 + $0x14] sm:$0xf]
      %v383 = vld [vmem:[%s376 + $0x18] sm:$0xf]
      %v384 = vld [vmem:[%s376 + $0x1c] sm:$0xf]
      %v385 = vld [vmem:[%s7] sm:$0xff]
      %v386 = vld [vmem:[%s7 + $0x8] sm:$0xff]
      %v387 = vld [vmem:[%s7 + $0x10] sm:$0xff]
      %v388 = vld [vmem:[%s7 + $0x18] sm:$0xff]
      %v389 = vld [vmem:[%s7 + $0x20] sm:$0xff]
      %v390 = vld [vmem:[%s7 + $0x28] sm:$0xff]
      %v391 = vld [vmem:[%s7 + $0x30] sm:$0xff]
      %v392 = vld [vmem:[%s7 + $0x38] sm:$0xff]
      %v393 = vld [vmem:[%s300] sm:$0xff]
      %v394 = vld [vmem:[%s300 + $0x8] sm:$0xff]
      %v395 = vld [vmem:[%s300 + $0x10] sm:$0xff]
      %v396 = vld [vmem:[%s300 + $0x18] sm:$0xff]
      %v397 = vld [vmem:[%s300 + $0x20] sm:$0xff]
      %v398 = vld [vmem:[%s300 + $0x28] sm:$0xff]
      %v399 = vld [vmem:[%s300 + $0x30] sm:$0xff]
      %v400 = vld [vmem:[%s300 + $0x38] sm:$0xff]
      %v401 = vpack.c.bf16 %v394, %v393
      %v402 = vpack.c.bf16 %v396, %v395
      %v403 = vpack.c.bf16 %v398, %v397
      %v404 = vpack.c.bf16 %v400, %v399
      %vm405 = vcmask 523264
      %v407 = vsel %vm405, %v307, 0
      %409 = vmatprep.subr.bf16.mxu0 0
      %410 = vmatpush1.bf16.msra.mxu0 %v401
      %411 = vmatprep.subr.bf16.mxu0 0
      %412 = vmatpush1.bf16.msra.mxu0 %v402
      %413 = vmatprep.subr.bf16.mxu0 0
      %414 = vmatpush1.bf16.msra.mxu0 %v403
      %415 = vmatprep.subr.bf16.mxu0 0
      %416 = vmatpush1.bf16.msra.mxu0 %v404
      %417 = vmatprep.subr.bf16.mxu0 0
      %418 = vmatpush1.bf16.msra.mxu0 0
      %419 = vmatprep.subr.bf16.mxu0 0
      %420 = vmatpush1.bf16.msra.mxu0 0
      %421 = vmatprep.subr.bf16.mxu0 0
      %422 = vmatpush1.bf16.msra.mxu0 0
      %423 = vmatprep.subr.bf16.mxu0 0
      %424 = vmatpush1.bf16.msra.mxu0 0
      %425 = vmatprep.subr.bf16.mxu0 0
      %426 = vmatpush1.bf16.msra.mxu0 0
      %427 = vmatprep.subr.bf16.mxu0 0
      %428 = vmatpush1.bf16.msra.mxu0 0
      %429 = vmatprep.subr.bf16.mxu0 0
      %430 = vmatpush1.bf16.msra.mxu0 0
      %431 = vmatprep.subr.bf16.mxu0 0
      %432 = vmatpush1.bf16.msra.mxu0 0
      %433 = vmatprep.subr.bf16.mxu0 0
      %434 = vmatpush1.bf16.msra.mxu0 0
      %435 = vmatprep.subr.bf16.mxu0 0
      %436 = vmatpush1.bf16.msra.mxu0 0
      %437 = vmatprep.subr.bf16.mxu0 0
      %438 = vmatpush1.bf16.msra.mxu0 0
      %439 = vmatprep.subr.bf16.mxu0 0
      %440 = vmatpush1.bf16.msra.mxu0 0
      %441 = vmatprep.mubr.bf16.mxu0 0
      %442 = vmatmul.mubr.bf16.gmra.mrb[0].mxu0 %v407
      %v443 = vpop.f32.mrb[0].mxu0
      %v444 = vadd.f32 0.0, %v443
      %v445 = vpop.f32.mrb[0].mxu0
      %v446 = vpop.f32.mrb[0].mxu0
      %v447 = vpop.f32.mrb[0].mxu0
      %448 = vdwg.mxu0
      %v449 = vmin.f32 %v444, 20.0
      %v450 = vmul.f32 %v449, 1.442695
      %v451 = vpow.pop %v450
      %v452 = vadd.f32 %v451, 2.0
      %v453 = vmul.f32 %v451, %v452
      %v454 = vmul.f32 %v444, %v453
      %v455 = vadd.f32 %v453, 2.0
      %v456 = vrcp.pop %v455
      %v457 = vmul.f32 %v454, %v456
      %459 = vset.pattern.permute.xlu0 0
      %460 = vperm.xlu0 %459, %v314
      %v461 = vpop.permute.xlu0 %460
      %v463 = vmul.f32 %v457, %v461
      %465 = vset.pattern.permute.xlu0 0
      %466 = vperm.xlu0 %465, %v321
      %v467 = vpop.permute.xlu0 %466
      %v469 = vadd.f32 %v463, %v467
      %v471 = vsel %vm405, %v309, 0
      %473 = vmatprep.subr.bf16.mxu0 0
      %474 = vmatpush1.bf16.msra.mxu0 %v401
      %475 = vmatprep.subr.bf16.mxu0 0
      %476 = vmatpush1.bf16.msra.mxu0 %v402
      %477 = vmatprep.subr.bf16.mxu0 0
      %478 = vmatpush1.bf16.msra.mxu0 %v403
      %479 = vmatprep.subr.bf16.mxu0 0
      %480 = vmatpush1.bf16.msra.mxu0 %v404
      %481 = vmatprep.subr.bf16.mxu0 0
      %482 = vmatpush1.bf16.msra.mxu0 0
      %483 = vmatprep.subr.bf16.mxu0 0
      %484 = vmatpush1.bf16.msra.mxu0 0
      %485 = vmatprep.subr.bf16.mxu0 0
      %486 = vmatpush1.bf16.msra.mxu0 0
      %487 = vmatprep.subr.bf16.mxu0 0
      %488 = vmatpush1.bf16.msra.mxu0 0
      %489 = vmatprep.subr.bf16.mxu0 0
      %490 = vmatpush1.bf16.msra.mxu0 0
      %491 = vmatprep.subr.bf16.mxu0 0
      %492 = vmatpush1.bf16.msra.mxu0 0
      %493 = vmatprep.subr.bf16.mxu0 0
      %494 = vmatpush1.bf16.msra.mxu0 0
      %495 = vmatprep.subr.bf16.mxu0 0
      %496 = vmatpush1.bf16.msra.mxu0 0
      %497 = vmatprep.subr.bf16.mxu0 0
      %498 = vmatpush1.bf16.msra.mxu0 0
      %499 = vmatprep.subr.bf16.mxu0 0
      %500 = vmatpush1.bf16.msra.mxu0 0
      %501 = vmatprep.subr.bf16.mxu0 0
      %502 = vmatpush1.bf16.msra.mxu0 0
      %503 = vmatprep.subr.bf16.mxu0 0
      %504 = vmatpush1.bf16.msra.mxu0 0
      %505 = vmatprep.mubr.bf16.mxu0 0
      %506 = vmatmul.mubr.bf16.gmra.mrb[0].mxu0 %v471
      %v507 = vpop.f32.mrb[0].mxu0
      %v508 = vadd.f32 0.0, %v507
      %v509 = vpop.f32.mrb[0].mxu0
      %v510 = vpop.f32.mrb[0].mxu0
      %v511 = vpop.f32.mrb[0].mxu0
      %512 = vdwg.mxu0
      %v513 = vmin.f32 %v508, 20.0
      %v514 = vmul.f32 %v513, 1.442695
      %v515 = vpow.pop %v514
      %v516 = vadd.f32 %v515, 2.0
      %v517 = vmul.f32 %v515, %v516
      %v518 = vmul.f32 %v508, %v517
      %v519 = vadd.f32 %v517, 2.0
      %v520 = vrcp.pop %v519
      %v521 = vmul.f32 %v518, %v520
      %523 = vset.pattern.permute.xlu0 0
      %524 = vperm.xlu0 %523, %v316
      %v525 = vpop.permute.xlu0 %524
      %v527 = vmul.f32 %v521, %v525
      %529 = vset.pattern.permute.xlu0 0
      %530 = vperm.xlu0 %529, %v323
      %v531 = vpop.permute.xlu0 %530
      %v533 = vadd.f32 %v527, %v531
      %v535 = vsel %vm405, %v311, 0
      %537 = vmatprep.subr.bf16.mxu0 0
      %538 = vmatpush1.bf16.msra.mxu0 %v401
      %539 = vmatprep.subr.bf16.mxu0 0
      %540 = vmatpush1.bf16.msra.mxu0 %v402
      %541 = vmatprep.subr.bf16.mxu0 0
      %542 = vmatpush1.bf16.msra.mxu0 %v403
      %543 = vmatprep.subr.bf16.mxu0 0
      %544 = vmatpush1.bf16.msra.mxu0 %v404
      %545 = vmatprep.subr.bf16.mxu0 0
      %546 = vmatpush1.bf16.msra.mxu0 0
      %547 = vmatprep.subr.bf16.mxu0 0
      %548 = vmatpush1.bf16.msra.mxu0 0
      %549 = vmatprep.subr.bf16.mxu0 0
      %550 = vmatpush1.bf16.msra.mxu0 0
      %551 = vmatprep.subr.bf16.mxu0 0
      %552 = vmatpush1.bf16.msra.mxu0 0
      %553 = vmatprep.subr.bf16.mxu0 0
      %554 = vmatpush1.bf16.msra.mxu0 0
      %555 = vmatprep.subr.bf16.mxu0 0
      %556 = vmatpush1.bf16.msra.mxu0 0
      %557 = vmatprep.subr.bf16.mxu0 0
      %558 = vmatpush1.bf16.msra.mxu0 0
      %559 = vmatprep.subr.bf16.mxu0 0
      %560 = vmatpush1.bf16.msra.mxu0 0
      %561 = vmatprep.subr.bf16.mxu0 0
      %562 = vmatpush1.bf16.msra.mxu0 0
      %563 = vmatprep.subr.bf16.mxu0 0
      %564 = vmatpush1.bf16.msra.mxu0 0
      %565 = vmatprep.subr.bf16.mxu0 0
      %566 = vmatpush1.bf16.msra.mxu0 0
      %567 = vmatprep.subr.bf16.mxu0 0
      %568 = vmatpush1.bf16.msra.mxu0 0
      %569 = vmatprep.mubr.bf16.mxu0 0
      %570 = vmatmul.mubr.bf16.gmra.mrb[0].mxu0 %v535
      %v571 = vpop.f32.mrb[0].mxu0
      %v572 = vadd.f32 0.0, %v571
      %v573 = vpop.f32.mrb[0].mxu0
      %v574 = vpop.f32.mrb[0].mxu0
      %v575 = vpop.f32.mrb[0].mxu0
      %576 = vdwg.mxu0
      %v577 = vmin.f32 %v572, 20.0
      %v578 = vmul.f32 %v577, 1.442695
      %v579 = vpow.pop %v578
      %v580 = vadd.f32 %v579, 2.0
      %v581 = vmul.f32 %v579, %v580
      %v582 = vmul.f32 %v572, %v581
      %v583 = vadd.f32 %v581, 2.0
      %v584 = vrcp.pop %v583
      %v585 = vmul.f32 %v582, %v584
      %587 = vset.pattern.permute.xlu0 0
      %588 = vperm.xlu0 %587, %v318
      %v589 = vpop.permute.xlu0 %588
      %v591 = vmul.f32 %v585, %v589
      %593 = vset.pattern.permute.xlu0 0
      %594 = vperm.xlu0 %593, %v325
      %v595 = vpop.permute.xlu0 %594
      %v597 = vadd.f32 %v591, %v595
      %v599 = vsel %vm405, %v313, 0
      %601 = vmatprep.subr.bf16.mxu0 0
      %602 = vmatpush1.bf16.msra.mxu0 %v401
      %603 = vmatprep.subr.bf16.mxu0 0
      %604 = vmatpush1.bf16.msra.mxu0 %v402
      %605 = vmatprep.subr.bf16.mxu0 0
      %606 = vmatpush1.bf16.msra.mxu0 %v403
      %607 = vmatprep.subr.bf16.mxu0 0
      %608 = vmatpush1.bf16.msra.mxu0 %v404
      %609 = vmatprep.subr.bf16.mxu0 0
      %610 = vmatpush1.bf16.msra.mxu0 0
      %611 = vmatprep.subr.bf16.mxu0 0
      %612 = vmatpush1.bf16.msra.mxu0 0
      %613 = vmatprep.subr.bf16.mxu0 0
      %614 = vmatpush1.bf16.msra.mxu0 0
      %615 = vmatprep.subr.bf16.mxu0 0
      %616 = vmatpush1.bf16.msra.mxu0 0
      %617 = vmatprep.subr.bf16.mxu0 0
      %618 = vmatpush1.bf16.msra.mxu0 0
      %619 = vmatprep.subr.bf16.mxu0 0
      %620 = vmatpush1.bf16.msra.mxu0 0
      %621 = vmatprep.subr.bf16.mxu0 0
      %622 = vmatpush1.bf16.msra.mxu0 0
      %623 = vmatprep.subr.bf16.mxu0 0
      %624 = vmatpush1.bf16.msra.mxu0 0
      %625 = vmatprep.subr.bf16.mxu0 0
      %626 = vmatpush1.bf16.msra.mxu0 0
      %627 = vmatprep.subr.bf16.mxu0 0
      %628 = vmatpush1.bf16.msra.mxu0 0
      %629 = vmatprep.subr.bf16.mxu0 0
      %630 = vmatpush1.bf16.msra.mxu0 0
      %631 = vmatprep.subr.bf16.mxu0 0
      %632 = vmatpush1.bf16.msra.mxu0 0
      %633 = vmatprep.mubr.bf16.mxu0 0
      %634 = vmatmul.mubr.bf16.gmra.mrb[0].mxu0 %v599
      %v635 = vpop.f32.mrb[0].mxu0
      %v636 = vadd.f32 0.0, %v635
      %v637 = vpop.f32.mrb[0].mxu0
      %v638 = vpop.f32.mrb[0].mxu0
      %v639 = vpop.f32.mrb[0].mxu0
      %640 = vdwg.mxu0
      %v641 = vmin.f32 %v636, 20.0
      %v642 = vmul.f32 %v641, 1.442695
      %v643 = vpow.pop %v642
      %v644 = vadd.f32 %v643, 2.0
      %v645 = vmul.f32 %v643, %v644
      %v646 = vmul.f32 %v636, %v645
      %v647 = vadd.f32 %v645, 2.0
      %v648 = vrcp.pop %v647
      %v649 = vmul.f32 %v646, %v648
      %651 = vset.pattern.permute.xlu0 0
      %652 = vperm.xlu0 %651, %v320
      %v653 = vpop.permute.xlu0 %652
      %v655 = vmul.f32 %v649, %v653
      %657 = vset.pattern.permute.xlu0 0
      %658 = vperm.xlu0 %657, %v327
      %v659 = vpop.permute.xlu0 %658
      %v661 = vadd.f32 %v655, %v659
      %v662 = vpack.c.bf16 %v661, %v661
      %664 = vrot.lane.b32.xlu0 %v469, 1
      %v665 = vpop.permute.xlu0 %664
      %vm667 = vcmask 7168
      %v668 = vsel %vm667, 0.0, %v665
      %669 = vrot.lane.b32.xlu0 %v469, 127
      %v670 = vpop.permute.xlu0 %669
      %vm672 = vcmask 121856
      %v673 = vsel %vm672, %v670, 0.0
      %v674 = vpack.c.bf16 %v668, %v668
      %v675 = vpack.c.bf16 %v469, %v469
      %vm676 = vcmask 31744
      %v678 = vsel %vm676, %v330, 0
      %vm680 = vcmask 1041408
      %v682 = vsel %vm680, %v675, 0
      %684 = vmatprep.subr.bf16.mxu0 0
      %685 = vmatpush1.bf16.msra.mxu0 %v682
      %686 = vmatprep.subr.bf16.mxu0 0
      %687 = vmatpush1.bf16.msra.mxu0 0
      %688 = vmatprep.subr.bf16.mxu0 0
      %689 = vmatpush1.bf16.msra.mxu0 0
      %690 = vmatprep.subr.bf16.mxu0 0
      %691 = vmatpush1.bf16.msra.mxu0 0
      %692 = vmatprep.subr.bf16.mxu0 0
      %693 = vmatpush1.bf16.msra.mxu0 0
      %694 = vmatprep.subr.bf16.mxu0 0
      %695 = vmatpush1.bf16.msra.mxu0 0
      %696 = vmatprep.subr.bf16.mxu0 0
      %697 = vmatpush1.bf16.msra.mxu0 0
      %698 = vmatprep.subr.bf16.mxu0 0
      %699 = vmatpush1.bf16.msra.mxu0 0
      %700 = vmatprep.subr.bf16.mxu0 0
      %701 = vmatpush1.bf16.msra.mxu0 0
      %702 = vmatprep.subr.bf16.mxu0 0
      %703 = vmatpush1.bf16.msra.mxu0 0
      %704 = vmatprep.subr.bf16.mxu0 0
      %705 = vmatpush1.bf16.msra.mxu0 0
      %706 = vmatprep.subr.bf16.mxu0 0
      %707 = vmatpush1.bf16.msra.mxu0 0
      %708 = vmatprep.subr.bf16.mxu0 0
      %709 = vmatpush1.bf16.msra.mxu0 0
      %710 = vmatprep.subr.bf16.mxu0 0
      %711 = vmatpush1.bf16.msra.mxu0 0
      %712 = vmatprep.subr.bf16.mxu0 0
      %713 = vmatpush1.bf16.msra.mxu0 0
      %714 = vmatprep.subr.bf16.mxu0 0
      %715 = vmatpush1.bf16.msra.mxu0 0
      %716 = vmatprep.mubr.bf16.mxu0 0
      %717 = vmatmul.mubr.bf16.gmra.mrb[0].mxu0 %v678
      %v718 = vpop.f32.mrb[0].mxu0
      %v719 = vadd.f32 0.0, %v718
      %v720 = vpop.f32.mrb[0].mxu0
      %v721 = vpop.f32.mrb[0].mxu0
      %v722 = vpop.f32.mrb[0].mxu0
      %723 = vdwg.mxu0
      %v725 = vsel %vm676, %v328, 0
      %v728 = vsel %vm680, %v674, 0
      %730 = vmatprep.subr.bf16.mxu0 0
      %731 = vmatpush1.bf16.msra.mxu0 %v728
      %732 = vmatprep.subr.bf16.mxu0 0
      %733 = vmatpush1.bf16.msra.mxu0 0
      %734 = vmatprep.subr.bf16.mxu0 0
      %735 = vmatpush1.bf16.msra.mxu0 0
      %736 = vmatprep.subr.bf16.mxu0 0
      %737 = vmatpush1.bf16.msra.mxu0 0
      %738 = vmatprep.subr.bf16.mxu0 0
      %739 = vmatpush1.bf16.msra.mxu0 0
      %740 = vmatprep.subr.bf16.mxu0 0
      %741 = vmatpush1.bf16.msra.mxu0 0
      %742 = vmatprep.subr.bf16.mxu0 0
      %743 = vmatpush1.bf16.msra.mxu0 0
      %744 = vmatprep.subr.bf16.mxu0 0
      %745 = vmatpush1.bf16.msra.mxu0 0
      %746 = vmatprep.subr.bf16.mxu0 0
      %747 = vmatpush1.bf16.msra.mxu0 0
      %748 = vmatprep.subr.bf16.mxu0 0
      %749 = vmatpush1.bf16.msra.mxu0 0
      %750 = vmatprep.subr.bf16.mxu0 0
      %751 = vmatpush1.bf16.msra.mxu0 0
      %752 = vmatprep.subr.bf16.mxu0 0
      %753 = vmatpush1.bf16.msra.mxu0 0
      %754 = vmatprep.subr.bf16.mxu0 0
      %755 = vmatpush1.bf16.msra.mxu0 0
      %756 = vmatprep.subr.bf16.mxu0 0
      %757 = vmatpush1.bf16.msra.mxu0 0
      %758 = vmatprep.subr.bf16.mxu0 0
      %759 = vmatpush1.bf16.msra.mxu0 0
      %760 = vmatprep.subr.bf16.mxu0 0
      %761 = vmatpush1.bf16.msra.mxu0 0
      %762 = vmatprep.mubr.bf16.mxu0 0
      %763 = vmatmul.mubr.bf16.gmra.mrb[0].mxu0 %v725
      %v764 = vpop.f32.mrb[0].mxu0
      %v765 = vadd.f32 %v719, %v764
      %v766 = vpop.f32.mrb[0].mxu0
      %v767 = vpop.f32.mrb[0].mxu0
      %v768 = vpop.f32.mrb[0].mxu0
      %769 = vdwg.mxu0
      %v770 = vpack.c.bf16 %v673, %v673
      %v772 = vsel %vm676, %v332, 0
      %v775 = vsel %vm680, %v770, 0
      %777 = vmatprep.subr.bf16.mxu0 0
      %778 = vmatpush1.bf16.msra.mxu0 %v775
      %779 = vmatprep.subr.bf16.mxu0 0
      %780 = vmatpush1.bf16.msra.mxu0 0
      %781 = vmatprep.subr.bf16.mxu0 0
      %782 = vmatpush1.bf16.msra.mxu0 0
      %783 = vmatprep.subr.bf16.mxu0 0
      %784 = vmatpush1.bf16.msra.mxu0 0
      %785 = vmatprep.subr.bf16.mxu0 0
      %786 = vmatpush1.bf16.msra.mxu0 0
      %787 = vmatprep.subr.bf16.mxu0 0
      %788 = vmatpush1.bf16.msra.mxu0 0
      %789 = vmatprep.subr.bf16.mxu0 0
      %790 = vmatpush1.bf16.msra.mxu0 0
      %791 = vmatprep.subr.bf16.mxu0 0
      %792 = vmatpush1.bf16.msra.mxu0 0
      %793 = vmatprep.subr.bf16.mxu0 0
      %794 = vmatpush1.bf16.msra.mxu0 0
      %795 = vmatprep.subr.bf16.mxu0 0
      %796 = vmatpush1.bf16.msra.mxu0 0
      %797 = vmatprep.subr.bf16.mxu0 0
      %798 = vmatpush1.bf16.msra.mxu0 0
      %799 = vmatprep.subr.bf16.mxu0 0
      %800 = vmatpush1.bf16.msra.mxu0 0
      %801 = vmatprep.subr.bf16.mxu0 0
      %802 = vmatpush1.bf16.msra.mxu0 0
      %803 = vmatprep.subr.bf16.mxu0 0
      %804 = vmatpush1.bf16.msra.mxu0 0
      %805 = vmatprep.subr.bf16.mxu0 0
      %806 = vmatpush1.bf16.msra.mxu0 0
      %807 = vmatprep.subr.bf16.mxu0 0
      %808 = vmatpush1.bf16.msra.mxu0 0
      %809 = vmatprep.mubr.bf16.mxu0 0
      %810 = vmatmul.mubr.bf16.gmra.mrb[0].mxu0 %v772
      %v811 = vpop.f32.mrb[0].mxu0
      %v812 = vadd.f32 0.0, %v811
      %v813 = vpop.f32.mrb[0].mxu0
      %v814 = vpop.f32.mrb[0].mxu0
      %v815 = vpop.f32.mrb[0].mxu0
      %816 = vdwg.mxu0
      %v817 = vadd.f32 %v765, %v812
      %819 = vset.pattern.permute.xlu0 0
      %820 = vperm.xlu0 %819, %v345
      %v821 = vpop.permute.xlu0 %820
      %v823 = vadd.f32 %v817, %v821
      %v824 = vmin.f32 %v823, 20.0
      %v825 = vmul.f32 %v824, 1.442695
      %v826 = vpow.pop %v825
      %v827 = vadd.f32 %v826, 2.0
      %v828 = vmul.f32 %v826, %v827
      %v829 = vmul.f32 %v823, %v828
      %v830 = vadd.f32 %v828, 2.0
      %v831 = vrcp.pop %v830
      %v832 = vmul.f32 %v829, %v831
      %v833 = vpack.c.bf16 %v832, %v832
      %v842 = vunpack.c.l.b16 %v350
      %v843 = vunpack.c.l.b16 %v351
      %v844 = vunpack.c.l.b16 %v352
      %v845 = vunpack.c.l.b16 %v353
      %v846 = vunpack.c.l.b16 %v354
      %v847 = vunpack.c.l.b16 %v355
      %v848 = vunpack.c.l.b16 %v356
      %v849 = vunpack.c.l.b16 %v357
      %v850 = vpack.c.b16 %v843, %v842
      %v851 = vpack.c.b16 %v845, %v844
      %v852 = vpack.c.b16 %v847, %v846
      %v853 = vpack.c.b16 %v849, %v848
      %v855 = vsel %vm676, %v850, 0
      %v858 = vsel %vm676, %v851, 0
      %v861 = vsel %vm676, %v852, 0
      %v864 = vsel %vm676, %v853, 0
      %v867 = vsel %vm680, %v833, 0
      %869 = vmatprep.subr.bf16.mxu0 0
      %870 = vmatpush1.bf16.msra.mxu0 %v867
      %871 = vmatprep.subr.bf16.mxu0 0
      %872 = vmatpush1.bf16.msra.mxu0 0
      %873 = vmatprep.subr.bf16.mxu0 0
      %874 = vmatpush1.bf16.msra.mxu0 0
      %875 = vmatprep.subr.bf16.mxu0 0
      %876 = vmatpush1.bf16.msra.mxu0 0
      %877 = vmatprep.subr.bf16.mxu0 0
      %878 = vmatpush1.bf16.msra.mxu0 0
      %879 = vmatprep.subr.bf16.mxu0 0
      %880 = vmatpush1.bf16.msra.mxu0 0
      %881 = vmatprep.subr.bf16.mxu0 0
      %882 = vmatpush1.bf16.msra.mxu0 0
      %883 = vmatprep.subr.bf16.mxu0 0
      %884 = vmatpush1.bf16.msra.mxu0 0
      %885 = vmatprep.subr.bf16.mxu0 0
      %886 = vmatpush1.bf16.msra.mxu0 0
      %887 = vmatprep.subr.bf16.mxu0 0
      %888 = vmatpush1.bf16.msra.mxu0 0
      %889 = vmatprep.subr.bf16.mxu0 0
      %890 = vmatpush1.bf16.msra.mxu0 0
      %891 = vmatprep.subr.bf16.mxu0 0
      %892 = vmatpush1.bf16.msra.mxu0 0
      %893 = vmatprep.subr.bf16.mxu0 0
      %894 = vmatpush1.bf16.msra.mxu0 0
      %895 = vmatprep.subr.bf16.mxu0 0
      %896 = vmatpush1.bf16.msra.mxu0 0
      %897 = vmatprep.subr.bf16.mxu0 0
      %898 = vmatpush1.bf16.msra.mxu0 0
      %899 = vmatprep.subr.bf16.mxu0 0
      %900 = vmatpush1.bf16.msra.mxu0 0
      %901 = vmatprep.mubr.bf16.mxu0 0
      %902 = vmatmul.mubr.bf16.gmra.mrb[0].mxu0 %v855
      %v903 = vpop.f32.mrb[0].mxu0
      %v904 = vadd.f32 0.0, %v903
      %v905 = vpop.f32.mrb[0].mxu0
      %v906 = vpop.f32.mrb[0].mxu0
      %v907 = vadd.f32 0.0, %v906
      %v908 = vpop.f32.mrb[0].mxu0
      %909 = vmatprep.mubr.bf16.mxu0 0
      %910 = vmatmul.mubr.bf16.gmra.mrb[0].mxu0 %v858
      %v911 = vpop.f32.mrb[0].mxu0
      %v912 = vadd.f32 0.0, %v911
      %v913 = vpop.f32.mrb[0].mxu0
      %v914 = vpop.f32.mrb[0].mxu0
      %v915 = vadd.f32 0.0, %v914
      %v916 = vpop.f32.mrb[0].mxu0
      %917 = vmatprep.mubr.bf16.mxu0 0
      %918 = vmatmul.mubr.bf16.gmra.mrb[0].mxu0 %v861
      %v919 = vpop.f32.mrb[0].mxu0
      %v920 = vadd.f32 0.0, %v919
      %v921 = vpop.f32.mrb[0].mxu0
      %v922 = vpop.f32.mrb[0].mxu0
      %v923 = vadd.f32 0.0, %v922
      %v924 = vpop.f32.mrb[0].mxu0
      %925 = vmatprep.mubr.bf16.mxu0 0
      %926 = vmatmul.mubr.bf16.gmra.mrb[0].mxu0 %v864
      %v927 = vpop.f32.mrb[0].mxu0
      %v928 = vadd.f32 0.0, %v927
      %v929 = vpop.f32.mrb[0].mxu0
      %v930 = vpop.f32.mrb[0].mxu0
      %v931 = vadd.f32 0.0, %v930
      %v932 = vpop.f32.mrb[0].mxu0
      %933 = vdwg.mxu0
      %v942 = vunpack.c.l.b16 %v377
      %v943 = vunpack.c.l.b16 %v378
      %v944 = vunpack.c.l.b16 %v379
      %v945 = vunpack.c.l.b16 %v380
      %v946 = vunpack.c.l.b16 %v381
      %v947 = vunpack.c.l.b16 %v382
      %v948 = vunpack.c.l.b16 %v383
      %v949 = vunpack.c.l.b16 %v384
      %v950 = vpack.c.b16 %v943, %v942
      %v951 = vpack.c.b16 %v945, %v944
      %v952 = vpack.c.b16 %v947, %v946
      %v953 = vpack.c.b16 %v949, %v948
      %v955 = vsel %vm676, %v950, 0
      %v958 = vsel %vm676, %v951, 0
      %v961 = vsel %vm676, %v952, 0
      %v964 = vsel %vm676, %v953, 0
      %v967 = vsel %vm680, %v662, 0
      %969 = vmatprep.subr.bf16.mxu0 0
      %970 = vmatpush1.bf16.msra.mxu0 %v967
      %971 = vmatprep.subr.bf16.mxu0 0
      %972 = vmatpush1.bf16.msra.mxu0 0
      %973 = vmatprep.subr.bf16.mxu0 0
      %974 = vmatpush1.bf16.msra.mxu0 0
      %975 = vmatprep.subr.bf16.mxu0 0
      %976 = vmatpush1.bf16.msra.mxu0 0
      %977 = vmatprep.subr.bf16.mxu0 0
      %978 = vmatpush1.bf16.msra.mxu0 0
      %979 = vmatprep.subr.bf16.mxu0 0
      %980 = vmatpush1.bf16.msra.mxu0 0
      %981 = vmatprep.subr.bf16.mxu0 0
      %982 = vmatpush1.bf16.msra.mxu0 0
      %983 = vmatprep.subr.bf16.mxu0 0
      %984 = vmatpush1.bf16.msra.mxu0 0
      %985 = vmatprep.subr.bf16.mxu0 0
      %986 = vmatpush1.bf16.msra.mxu0 0
      %987 = vmatprep.subr.bf16.mxu0 0
      %988 = vmatpush1.bf16.msra.mxu0 0
      %989 = vmatprep.subr.bf16.mxu0 0
      %990 = vmatpush1.bf16.msra.mxu0 0
      %991 = vmatprep.subr.bf16.mxu0 0
      %992 = vmatpush1.bf16.msra.mxu0 0
      %993 = vmatprep.subr.bf16.mxu0 0
      %994 = vmatpush1.bf16.msra.mxu0 0
      %995 = vmatprep.subr.bf16.mxu0 0
      %996 = vmatpush1.bf16.msra.mxu0 0
      %997 = vmatprep.subr.bf16.mxu0 0
      %998 = vmatpush1.bf16.msra.mxu0 0
      %999 = vmatprep.subr.bf16.mxu0 0
      %1000 = vmatpush1.bf16.msra.mxu0 0
      %1001 = vmatprep.mubr.bf16.mxu0 0
      %1002 = vmatmul.mubr.bf16.gmra.mrb[0].mxu0 %v955
      %v1003 = vpop.f32.mrb[0].mxu0
      %v1004 = vadd.f32 %v904, %v1003
      %v1005 = vpop.f32.mrb[0].mxu0
      %v1006 = vpop.f32.mrb[0].mxu0
      %v1007 = vadd.f32 %v907, %v1006
      %v1008 = vpop.f32.mrb[0].mxu0
      %1009 = vmatprep.mubr.bf16.mxu0 0
      %1010 = vmatmul.mubr.bf16.gmra.mrb[0].mxu0 %v958
      %v1011 = vpop.f32.mrb[0].mxu0
      %v1012 = vadd.f32 %v912, %v1011
      %v1013 = vpop.f32.mrb[0].mxu0
      %v1014 = vpop.f32.mrb[0].mxu0
      %v1015 = vadd.f32 %v915, %v1014
      %v1016 = vpop.f32.mrb[0].mxu0
      %1017 = vmatprep.mubr.bf16.mxu0 0
      %1018 = vmatmul.mubr.bf16.gmra.mrb[0].mxu0 %v961
      %v1019 = vpop.f32.mrb[0].mxu0
      %v1020 = vadd.f32 %v920, %v1019
      %v1021 = vpop.f32.mrb[0].mxu0
      %v1022 = vpop.f32.mrb[0].mxu0
      %v1023 = vadd.f32 %v923, %v1022
      %v1024 = vpop.f32.mrb[0].mxu0
      %1025 = vmatprep.mubr.bf16.mxu0 0
      %1026 = vmatmul.mubr.bf16.gmra.mrb[0].mxu0 %v964
      %v1027 = vpop.f32.mrb[0].mxu0
      %v1028 = vadd.f32 %v928, %v1027
      %v1029 = vpop.f32.mrb[0].mxu0
      %v1030 = vpop.f32.mrb[0].mxu0
      %v1031 = vadd.f32 %v931, %v1030
      %v1032 = vpop.f32.mrb[0].mxu0
      %1033 = vdwg.mxu0
      %v1034 = vadd.f32 %v832, %v533
      %1036 = vrot.lane.b32.xlu0 %v1034, 1
      %v1037 = vpop.permute.xlu0 %1036
      %v1039 = vsel %vm667, 0.0, %v1037
      %1040 = vrot.lane.b32.xlu0 %v1034, 127
      %v1041 = vpop.permute.xlu0 %1040
      %v1043 = vsel %vm672, %v1041, 0.0
      %v1044 = vpack.c.bf16 %v1039, %v1039
      %v1045 = vpack.c.bf16 %v1034, %v1034
      %v1047 = vsel %vm676, %v336, 0
      %v1050 = vsel %vm680, %v1045, 0
      %1052 = vmatprep.subr.bf16.mxu0 0
      %1053 = vmatpush1.bf16.msra.mxu0 %v1050
      %1054 = vmatprep.subr.bf16.mxu0 0
      %1055 = vmatpush1.bf16.msra.mxu0 0
      %1056 = vmatprep.subr.bf16.mxu0 0
      %1057 = vmatpush1.bf16.msra.mxu0 0
      %1058 = vmatprep.subr.bf16.mxu0 0
      %1059 = vmatpush1.bf16.msra.mxu0 0
      %1060 = vmatprep.subr.bf16.mxu0 0
      %1061 = vmatpush1.bf16.msra.mxu0 0
      %1062 = vmatprep.subr.bf16.mxu0 0
      %1063 = vmatpush1.bf16.msra.mxu0 0
      %1064 = vmatprep.subr.bf16.mxu0 0
      %1065 = vmatpush1.bf16.msra.mxu0 0
      %1066 = vmatprep.subr.bf16.mxu0 0
      %1067 = vmatpush1.bf16.msra.mxu0 0
      %1068 = vmatprep.subr.bf16.mxu0 0
      %1069 = vmatpush1.bf16.msra.mxu0 0
      %1070 = vmatprep.subr.bf16.mxu0 0
      %1071 = vmatpush1.bf16.msra.mxu0 0
      %1072 = vmatprep.subr.bf16.mxu0 0
      %1073 = vmatpush1.bf16.msra.mxu0 0
      %1074 = vmatprep.subr.bf16.mxu0 0
      %1075 = vmatpush1.bf16.msra.mxu0 0
      %1076 = vmatprep.subr.bf16.mxu0 0
      %1077 = vmatpush1.bf16.msra.mxu0 0
      %1078 = vmatprep.subr.bf16.mxu0 0
      %1079 = vmatpush1.bf16.msra.mxu0 0
      %1080 = vmatprep.subr.bf16.mxu0 0
      %1081 = vmatpush1.bf16.msra.mxu0 0
      %1082 = vmatprep.subr.bf16.mxu0 0
      %1083 = vmatpush1.bf16.msra.mxu0 0
      %1084 = vmatprep.mubr.bf16.mxu0 0
      %1085 = vmatmul.mubr.bf16.gmra.mrb[0].mxu0 %v1047
      %v1086 = vpop.f32.mrb[0].mxu0
      %v1087 = vadd.f32 0.0, %v1086
      %v1088 = vpop.f32.mrb[0].mxu0
      %v1089 = vpop.f32.mrb[0].mxu0
      %v1090 = vpop.f32.mrb[0].mxu0
      %1091 = vdwg.mxu0
      %v1093 = vsel %vm676, %v334, 0
      %v1096 = vsel %vm680, %v1044, 0
      %1098 = vmatprep.subr.bf16.mxu0 0
      %1099 = vmatpush1.bf16.msra.mxu0 %v1096
      %1100 = vmatprep.subr.bf16.mxu0 0
      %1101 = vmatpush1.bf16.msra.mxu0 0
      %1102 = vmatprep.subr.bf16.mxu0 0
      %1103 = vmatpush1.bf16.msra.mxu0 0
      %1104 = vmatprep.subr.bf16.mxu0 0
      %1105 = vmatpush1.bf16.msra.mxu0 0
      %1106 = vmatprep.subr.bf16.mxu0 0
      %1107 = vmatpush1.bf16.msra.mxu0 0
      %1108 = vmatprep.subr.bf16.mxu0 0
      %1109 = vmatpush1.bf16.msra.mxu0 0
      %1110 = vmatprep.subr.bf16.mxu0 0
      %1111 = vmatpush1.bf16.msra.mxu0 0
      %1112 = vmatprep.subr.bf16.mxu0 0
      %1113 = vmatpush1.bf16.msra.mxu0 0
      %1114 = vmatprep.subr.bf16.mxu0 0
      %1115 = vmatpush1.bf16.msra.mxu0 0
      %1116 = vmatprep.subr.bf16.mxu0 0
      %1117 = vmatpush1.bf16.msra.mxu0 0
      %1118 = vmatprep.subr.bf16.mxu0 0
      %1119 = vmatpush1.bf16.msra.mxu0 0
      %1120 = vmatprep.subr.bf16.mxu0 0
      %1121 = vmatpush1.bf16.msra.mxu0 0
      %1122 = vmatprep.subr.bf16.mxu0 0
      %1123 = vmatpush1.bf16.msra.mxu0 0
      %1124 = vmatprep.subr.bf16.mxu0 0
      %1125 = vmatpush1.bf16.msra.mxu0 0
      %1126 = vmatprep.subr.bf16.mxu0 0
      %1127 = vmatpush1.bf16.msra.mxu0 0
      %1128 = vmatprep.subr.bf16.mxu0 0
      %1129 = vmatpush1.bf16.msra.mxu0 0
      %1130 = vmatprep.mubr.bf16.mxu0 0
      %1131 = vmatmul.mubr.bf16.gmra.mrb[0].mxu0 %v1093
      %v1132 = vpop.f32.mrb[0].mxu0
      %v1133 = vadd.f32 %v1087, %v1132
      %v1134 = vpop.f32.mrb[0].mxu0
      %v1135 = vpop.f32.mrb[0].mxu0
      %v1136 = vpop.f32.mrb[0].mxu0
      %1137 = vdwg.mxu0
      %v1138 = vpack.c.bf16 %v1043, %v1043
      %v1140 = vsel %vm676, %v338, 0
      %v1143 = vsel %vm680, %v1138, 0
      %1145 = vmatprep.subr.bf16.mxu0 0
      %1146 = vmatpush1.bf16.msra.mxu0 %v1143
      %1147 = vmatprep.subr.bf16.mxu0 0
      %1148 = vmatpush1.bf16.msra.mxu0 0
      %1149 = vmatprep.subr.bf16.mxu0 0
      %1150 = vmatpush1.bf16.msra.mxu0 0
      %1151 = vmatprep.subr.bf16.mxu0 0
      %1152 = vmatpush1.bf16.msra.mxu0 0
      %1153 = vmatprep.subr.bf16.mxu0 0
      %1154 = vmatpush1.bf16.msra.mxu0 0
      %1155 = vmatprep.subr.bf16.mxu0 0
      %1156 = vmatpush1.bf16.msra.mxu0 0
      %1157 = vmatprep.subr.bf16.mxu0 0
      %1158 = vmatpush1.bf16.msra.mxu0 0
      %1159 = vmatprep.subr.bf16.mxu0 0
      %1160 = vmatpush1.bf16.msra.mxu0 0
      %1161 = vmatprep.subr.bf16.mxu0 0
      %1162 = vmatpush1.bf16.msra.mxu0 0
      %1163 = vmatprep.subr.bf16.mxu0 0
      %1164 = vmatpush1.bf16.msra.mxu0 0
      %1165 = vmatprep.subr.bf16.mxu0 0
      %1166 = vmatpush1.bf16.msra.mxu0 0
      %1167 = vmatprep.subr.bf16.mxu0 0
      %1168 = vmatpush1.bf16.msra.mxu0 0
      %1169 = vmatprep.subr.bf16.mxu0 0
      %1170 = vmatpush1.bf16.msra.mxu0 0
      %1171 = vmatprep.subr.bf16.mxu0 0
      %1172 = vmatpush1.bf16.msra.mxu0 0
      %1173 = vmatprep.subr.bf16.mxu0 0
      %1174 = vmatpush1.bf16.msra.mxu0 0
      %1175 = vmatprep.subr.bf16.mxu0 0
      %1176 = vmatpush1.bf16.msra.mxu0 0
      %1177 = vmatprep.mubr.bf16.mxu0 0
      %1178 = vmatmul.mubr.bf16.gmra.mrb[0].mxu0 %v1140
      %v1179 = vpop.f32.mrb[0].mxu0
      %v1180 = vadd.f32 0.0, %v1179
      %v1181 = vpop.f32.mrb[0].mxu0
      %v1182 = vpop.f32.mrb[0].mxu0
      %v1183 = vpop.f32.mrb[0].mxu0
      %1184 = vdwg.mxu0
      %v1185 = vadd.f32 %v1133, %v1180
      %1187 = vset.pattern.permute.xlu0 0
      %1188 = vperm.xlu0 %1187, %v347
      %v1189 = vpop.permute.xlu0 %1188
      %v1191 = vadd.f32 %v1185, %v1189
      %v1192 = vmin.f32 %v1191, 20.0
      %v1193 = vmul.f32 %v1192, 1.442695
      %v1194 = vpow.pop %v1193
      %v1195 = vadd.f32 %v1194, 2.0
      %v1196 = vmul.f32 %v1194, %v1195
      %v1197 = vmul.f32 %v1191, %v1196
      %v1198 = vadd.f32 %v1196, 2.0
      %v1199 = vrcp.pop %v1198
      %v1200 = vmul.f32 %v1197, %v1199
      %v1201 = vpack.c.bf16 %v1200, %v1200
      %v1210 = vunpack.c.l.b16 %v359
      %v1211 = vunpack.c.l.b16 %v360
      %v1212 = vunpack.c.l.b16 %v361
      %v1213 = vunpack.c.l.b16 %v362
      %v1214 = vunpack.c.l.b16 %v363
      %v1215 = vunpack.c.l.b16 %v364
      %v1216 = vunpack.c.l.b16 %v365
      %v1217 = vunpack.c.l.b16 %v366
      %v1218 = vpack.c.b16 %v1211, %v1210
      %v1219 = vpack.c.b16 %v1213, %v1212
      %v1220 = vpack.c.b16 %v1215, %v1214
      %v1221 = vpack.c.b16 %v1217, %v1216
      %v1223 = vsel %vm676, %v1218, 0
      %v1226 = vsel %vm676, %v1219, 0
      %v1229 = vsel %vm676, %v1220, 0
      %v1232 = vsel %vm676, %v1221, 0
      %v1235 = vsel %vm680, %v1201, 0
      %1237 = vmatprep.subr.bf16.mxu0 0
      %1238 = vmatpush1.bf16.msra.mxu0 %v1235
      %1239 = vmatprep.subr.bf16.mxu0 0
      %1240 = vmatpush1.bf16.msra.mxu0 0
      %1241 = vmatprep.subr.bf16.mxu0 0
      %1242 = vmatpush1.bf16.msra.mxu0 0
      %1243 = vmatprep.subr.bf16.mxu0 0
      %1244 = vmatpush1.bf16.msra.mxu0 0
      %1245 = vmatprep.subr.bf16.mxu0 0
      %1246 = vmatpush1.bf16.msra.mxu0 0
      %1247 = vmatprep.subr.bf16.mxu0 0
      %1248 = vmatpush1.bf16.msra.mxu0 0
      %1249 = vmatprep.subr.bf16.mxu0 0
      %1250 = vmatpush1.bf16.msra.mxu0 0
      %1251 = vmatprep.subr.bf16.mxu0 0
      %1252 = vmatpush1.bf16.msra.mxu0 0
      %1253 = vmatprep.subr.bf16.mxu0 0
      %1254 = vmatpush1.bf16.msra.mxu0 0
      %1255 = vmatprep.subr.bf16.mxu0 0
      %1256 = vmatpush1.bf16.msra.mxu0 0
      %1257 = vmatprep.subr.bf16.mxu0 0
      %1258 = vmatpush1.bf16.msra.mxu0 0
      %1259 = vmatprep.subr.bf16.mxu0 0
      %1260 = vmatpush1.bf16.msra.mxu0 0
      %1261 = vmatprep.subr.bf16.mxu0 0
      %1262 = vmatpush1.bf16.msra.mxu0 0
      %1263 = vmatprep.subr.bf16.mxu0 0
      %1264 = vmatpush1.bf16.msra.mxu0 0
      %1265 = vmatprep.subr.bf16.mxu0 0
      %1266 = vmatpush1.bf16.msra.mxu0 0
      %1267 = vmatprep.subr.bf16.mxu0 0
      %1268 = vmatpush1.bf16.msra.mxu0 0
      %1269 = vmatprep.mubr.bf16.mxu0 0
      %1270 = vmatmul.mubr.bf16.gmra.mrb[0].mxu0 %v1223
      %v1271 = vpop.f32.mrb[0].mxu0
      %v1272 = vadd.f32 0.0, %v1271
      %v1273 = vpop.f32.mrb[0].mxu0
      %v1274 = vpop.f32.mrb[0].mxu0
      %v1275 = vadd.f32 0.0, %v1274
      %v1276 = vpop.f32.mrb[0].mxu0
      %1277 = vmatprep.mubr.bf16.mxu0 0
      %1278 = vmatmul.mubr.bf16.gmra.mrb[0].mxu0 %v1226
      %v1279 = vpop.f32.mrb[0].mxu0
      %v1280 = vadd.f32 0.0, %v1279
      %v1281 = vpop.f32.mrb[0].mxu0
      %v1282 = vpop.f32.mrb[0].mxu0
      %v1283 = vadd.f32 0.0, %v1282
      %v1284 = vpop.f32.mrb[0].mxu0
      %1285 = vmatprep.mubr.bf16.mxu0 0
      %1286 = vmatmul.mubr.bf16.gmra.mrb[0].mxu0 %v1229
      %v1287 = vpop.f32.mrb[0].mxu0
      %v1288 = vadd.f32 0.0, %v1287
      %v1289 = vpop.f32.mrb[0].mxu0
      %v1290 = vpop.f32.mrb[0].mxu0
      %v1291 = vadd.f32 0.0, %v1290
      %v1292 = vpop.f32.mrb[0].mxu0
      %1293 = vmatprep.mubr.bf16.mxu0 0
      %1294 = vmatmul.mubr.bf16.gmra.mrb[0].mxu0 %v1232
      %v1295 = vpop.f32.mrb[0].mxu0
      %v1296 = vadd.f32 0.0, %v1295
      %v1297 = vpop.f32.mrb[0].mxu0
      %v1298 = vpop.f32.mrb[0].mxu0
      %v1299 = vadd.f32 0.0, %v1298
      %v1300 = vpop.f32.mrb[0].mxu0
      %1301 = vdwg.mxu0
      %v1302 = vadd.f32 %v1004, %v1272
      %v1303 = vadd.f32 %v1007, %v1275
      %v1304 = vadd.f32 %v1012, %v1280
      %v1305 = vadd.f32 %v1015, %v1283
      %v1306 = vadd.f32 %v1020, %v1288
      %v1307 = vadd.f32 %v1023, %v1291
      %v1308 = vadd.f32 %v1028, %v1296
      %v1309 = vadd.f32 %v1031, %v1299
      %v1310 = vadd.f32 %v1200, %v597
      %1312 = vrot.lane.b32.xlu0 %v1310, 1
      %v1313 = vpop.permute.xlu0 %1312
      %v1315 = vsel %vm667, 0.0, %v1313
      %1316 = vrot.lane.b32.xlu0 %v1310, 127
      %v1317 = vpop.permute.xlu0 %1316
      %v1319 = vsel %vm672, %v1317, 0.0
      %v1320 = vpack.c.bf16 %v1315, %v1315
      %v1321 = vpack.c.bf16 %v1310, %v1310
      %v1323 = vsel %vm676, %v342, 0
      %v1326 = vsel %vm680, %v1321, 0
      %1328 = vmatprep.subr.bf16.mxu0 0
      %1329 = vmatpush1.bf16.msra.mxu0 %v1326
      %1330 = vmatprep.subr.bf16.mxu0 0
      %1331 = vmatpush1.bf16.msra.mxu0 0
      %1332 = vmatprep.subr.bf16.mxu0 0
      %1333 = vmatpush1.bf16.msra.mxu0 0
      %1334 = vmatprep.subr.bf16.mxu0 0
      %1335 = vmatpush1.bf16.msra.mxu0 0
      %1336 = vmatprep.subr.bf16.mxu0 0
      %1337 = vmatpush1.bf16.msra.mxu0 0
      %1338 = vmatprep.subr.bf16.mxu0 0
      %1339 = vmatpush1.bf16.msra.mxu0 0
      %1340 = vmatprep.subr.bf16.mxu0 0
      %1341 = vmatpush1.bf16.msra.mxu0 0
      %1342 = vmatprep.subr.bf16.mxu0 0
      %1343 = vmatpush1.bf16.msra.mxu0 0
      %1344 = vmatprep.subr.bf16.mxu0 0
      %1345 = vmatpush1.bf16.msra.mxu0 0
      %1346 = vmatprep.subr.bf16.mxu0 0
      %1347 = vmatpush1.bf16.msra.mxu0 0
      %1348 = vmatprep.subr.bf16.mxu0 0
      %1349 = vmatpush1.bf16.msra.mxu0 0
      %1350 = vmatprep.subr.bf16.mxu0 0
      %1351 = vmatpush1.bf16.msra.mxu0 0
      %1352 = vmatprep.subr.bf16.mxu0 0
      %1353 = vmatpush1.bf16.msra.mxu0 0
      %1354 = vmatprep.subr.bf16.mxu0 0
      %1355 = vmatpush1.bf16.msra.mxu0 0
      %1356 = vmatprep.subr.bf16.mxu0 0
      %1357 = vmatpush1.bf16.msra.mxu0 0
      %1358 = vmatprep.subr.bf16.mxu0 0
      %1359 = vmatpush1.bf16.msra.mxu0 0
      %1360 = vmatprep.mubr.bf16.mxu0 0
      %1361 = vmatmul.mubr.bf16.gmra.mrb[0].mxu0 %v1323
      %v1362 = vpop.f32.mrb[0].mxu0
      %v1363 = vadd.f32 0.0, %v1362
      %v1364 = vpop.f32.mrb[0].mxu0
      %v1365 = vpop.f32.mrb[0].mxu0
      %v1366 = vpop.f32.mrb[0].mxu0
      %1367 = vdwg.mxu0
      %v1369 = vsel %vm676, %v340, 0
      %v1372 = vsel %vm680, %v1320, 0
      %1374 = vmatprep.subr.bf16.mxu0 0
      %1375 = vmatpush1.bf16.msra.mxu0 %v1372
      %1376 = vmatprep.subr.bf16.mxu0 0
      %1377 = vmatpush1.bf16.msra.mxu0 0
      %1378 = vmatprep.subr.bf16.mxu0 0
      %1379 = vmatpush1.bf16.msra.mxu0 0
      %1380 = vmatprep.subr.bf16.mxu0 0
      %1381 = vmatpush1.bf16.msra.mxu0 0
      %1382 = vmatprep.subr.bf16.mxu0 0
      %1383 = vmatpush1.bf16.msra.mxu0 0
      %1384 = vmatprep.subr.bf16.mxu0 0
      %1385 = vmatpush1.bf16.msra.mxu0 0
      %1386 = vmatprep.subr.bf16.mxu0 0
      %1387 = vmatpush1.bf16.msra.mxu0 0
      %1388 = vmatprep.subr.bf16.mxu0 0
      %1389 = vmatpush1.bf16.msra.mxu0 0
      %1390 = vmatprep.subr.bf16.mxu0 0
      %1391 = vmatpush1.bf16.msra.mxu0 0
      %1392 = vmatprep.subr.bf16.mxu0 0
      %1393 = vmatpush1.bf16.msra.mxu0 0
      %1394 = vmatprep.subr.bf16.mxu0 0
      %1395 = vmatpush1.bf16.msra.mxu0 0
      %1396 = vmatprep.subr.bf16.mxu0 0
      %1397 = vmatpush1.bf16.msra.mxu0 0
      %1398 = vmatprep.subr.bf16.mxu0 0
      %1399 = vmatpush1.bf16.msra.mxu0 0
      %1400 = vmatprep.subr.bf16.mxu0 0
      %1401 = vmatpush1.bf16.msra.mxu0 0
      %1402 = vmatprep.subr.bf16.mxu0 0
      %1403 = vmatpush1.bf16.msra.mxu0 0
      %1404 = vmatprep.subr.bf16.mxu0 0
      %1405 = vmatpush1.bf16.msra.mxu0 0
      %1406 = vmatprep.mubr.bf16.mxu0 0
      %1407 = vmatmul.mubr.bf16.gmra.mrb[0].mxu0 %v1369
      %v1408 = vpop.f32.mrb[0].mxu0
      %v1409 = vadd.f32 %v1363, %v1408
      %v1410 = vpop.f32.mrb[0].mxu0
      %v1411 = vpop.f32.mrb[0].mxu0
      %v1412 = vpop.f32.mrb[0].mxu0
      %1413 = vdwg.mxu0
      %v1414 = vpack.c.bf16 %v1319, %v1319
      %v1416 = vsel %vm676, %v344, 0
      %v1419 = vsel %vm680, %v1414, 0
      %1421 = vmatprep.subr.bf16.mxu0 0
      %1422 = vmatpush1.bf16.msra.mxu0 %v1419
      %1423 = vmatprep.subr.bf16.mxu0 0
      %1424 = vmatpush1.bf16.msra.mxu0 0
      %1425 = vmatprep.subr.bf16.mxu0 0
      %1426 = vmatpush1.bf16.msra.mxu0 0
      %1427 = vmatprep.subr.bf16.mxu0 0
      %1428 = vmatpush1.bf16.msra.mxu0 0
      %1429 = vmatprep.subr.bf16.mxu0 0
      %1430 = vmatpush1.bf16.msra.mxu0 0
      %1431 = vmatprep.subr.bf16.mxu0 0
      %1432 = vmatpush1.bf16.msra.mxu0 0
      %1433 = vmatprep.subr.bf16.mxu0 0
      %1434 = vmatpush1.bf16.msra.mxu0 0
      %1435 = vmatprep.subr.bf16.mxu0 0
      %1436 = vmatpush1.bf16.msra.mxu0 0
      %1437 = vmatprep.subr.bf16.mxu0 0
      %1438 = vmatpush1.bf16.msra.mxu0 0
      %1439 = vmatprep.subr.bf16.mxu0 0
      %1440 = vmatpush1.bf16.msra.mxu0 0
      %1441 = vmatprep.subr.bf16.mxu0 0
      %1442 = vmatpush1.bf16.msra.mxu0 0
      %1443 = vmatprep.subr.bf16.mxu0 0
      %1444 = vmatpush1.bf16.msra.mxu0 0
      %1445 = vmatprep.subr.bf16.mxu0 0
      %1446 = vmatpush1.bf16.msra.mxu0 0
      %1447 = vmatprep.subr.bf16.mxu0 0
      %1448 = vmatpush1.bf16.msra.mxu0 0
      %1449 = vmatprep.subr.bf16.mxu0 0
      %1450 = vmatpush1.bf16.msra.mxu0 0
      %1451 = vmatprep.subr.bf16.mxu0 0
      %1452 = vmatpush1.bf16.msra.mxu0 0
      %1453 = vmatprep.mubr.bf16.mxu0 0
      %1454 = vmatmul.mubr.bf16.gmra.mrb[0].mxu0 %v1416
      %v1455 = vpop.f32.mrb[0].mxu0
      %v1456 = vadd.f32 0.0, %v1455
      %v1457 = vpop.f32.mrb[0].mxu0
      %v1458 = vpop.f32.mrb[0].mxu0
      %v1459 = vpop.f32.mrb[0].mxu0
      %1460 = vdwg.mxu0
      %v1461 = vadd.f32 %v1409, %v1456
      %1463 = vset.pattern.permute.xlu0 0
      %1464 = vperm.xlu0 %1463, %v349
      %v1465 = vpop.permute.xlu0 %1464
      %v1467 = vadd.f32 %v1461, %v1465
      %v1468 = vmin.f32 %v1467, 20.0
      %v1469 = vmul.f32 %v1468, 1.442695
      %v1470 = vpow.pop %v1469
      %v1471 = vadd.f32 %v1470, 2.0
      %v1472 = vmul.f32 %v1470, %v1471
      %v1473 = vmul.f32 %v1467, %v1472
      %v1474 = vadd.f32 %v1472, 2.0
      %v1475 = vrcp.pop %v1474
      %v1476 = vmul.f32 %v1473, %v1475
      %v1477 = vpack.c.bf16 %v1476, %v1476
      %v1486 = vunpack.c.l.b16 %v368
      %v1487 = vunpack.c.l.b16 %v369
      %v1488 = vunpack.c.l.b16 %v370
      %v1489 = vunpack.c.l.b16 %v371
      %v1490 = vunpack.c.l.b16 %v372
      %v1491 = vunpack.c.l.b16 %v373
      %v1492 = vunpack.c.l.b16 %v374
      %v1493 = vunpack.c.l.b16 %v375
      %v1494 = vpack.c.b16 %v1487, %v1486
      %v1495 = vpack.c.b16 %v1489, %v1488
      %v1496 = vpack.c.b16 %v1491, %v1490
      %v1497 = vpack.c.b16 %v1493, %v1492
      %v1499 = vsel %vm676, %v1494, 0
      %v1502 = vsel %vm676, %v1495, 0
      %v1505 = vsel %vm676, %v1496, 0
      %v1508 = vsel %vm676, %v1497, 0
      %v1511 = vsel %vm680, %v1477, 0
      %1513 = vmatprep.subr.bf16.mxu0 0
      %1514 = vmatpush1.bf16.msra.mxu0 %v1511
      %1515 = vmatprep.subr.bf16.mxu0 0
      %1516 = vmatpush1.bf16.msra.mxu0 0
      %1517 = vmatprep.subr.bf16.mxu0 0
      %1518 = vmatpush1.bf16.msra.mxu0 0
      %1519 = vmatprep.subr.bf16.mxu0 0
      %1520 = vmatpush1.bf16.msra.mxu0 0
      %1521 = vmatprep.subr.bf16.mxu0 0
      %1522 = vmatpush1.bf16.msra.mxu0 0
      %1523 = vmatprep.subr.bf16.mxu0 0
      %1524 = vmatpush1.bf16.msra.mxu0 0
      %1525 = vmatprep.subr.bf16.mxu0 0
      %1526 = vmatpush1.bf16.msra.mxu0 0
      %1527 = vmatprep.subr.bf16.mxu0 0
      %1528 = vmatpush1.bf16.msra.mxu0 0
      %1529 = vmatprep.subr.bf16.mxu0 0
      %1530 = vmatpush1.bf16.msra.mxu0 0
      %1531 = vmatprep.subr.bf16.mxu0 0
      %1532 = vmatpush1.bf16.msra.mxu0 0
      %1533 = vmatprep.subr.bf16.mxu0 0
      %1534 = vmatpush1.bf16.msra.mxu0 0
      %1535 = vmatprep.subr.bf16.mxu0 0
      %1536 = vmatpush1.bf16.msra.mxu0 0
      %1537 = vmatprep.subr.bf16.mxu0 0
      %1538 = vmatpush1.bf16.msra.mxu0 0
      %1539 = vmatprep.subr.bf16.mxu0 0
      %1540 = vmatpush1.bf16.msra.mxu0 0
      %1541 = vmatprep.subr.bf16.mxu0 0
      %1542 = vmatpush1.bf16.msra.mxu0 0
      %1543 = vmatprep.subr.bf16.mxu0 0
      %1544 = vmatpush1.bf16.msra.mxu0 0
      %1545 = vmatprep.mubr.bf16.mxu0 0
      %1546 = vmatmul.mubr.bf16.gmra.mrb[0].mxu0 %v1499
      %v1547 = vpop.f32.mrb[0].mxu0
      %v1548 = vadd.f32 0.0, %v1547
      %v1549 = vpop.f32.mrb[0].mxu0
      %v1550 = vpop.f32.mrb[0].mxu0
      %v1551 = vadd.f32 0.0, %v1550
      %v1552 = vpop.f32.mrb[0].mxu0
      %1553 = vmatprep.mubr.bf16.mxu0 0
      %1554 = vmatmul.mubr.bf16.gmra.mrb[0].mxu0 %v1502
      %v1555 = vpop.f32.mrb[0].mxu0
      %v1556 = vadd.f32 0.0, %v1555
      %v1557 = vpop.f32.mrb[0].mxu0
      %v1558 = vpop.f32.mrb[0].mxu0
      %v1559 = vadd.f32 0.0, %v1558
      %v1560 = vpop.f32.mrb[0].mxu0
      %1561 = vmatprep.mubr.bf16.mxu0 0
      %1562 = vmatmul.mubr.bf16.gmra.mrb[0].mxu0 %v1505
      %v1563 = vpop.f32.mrb[0].mxu0
      %v1564 = vadd.f32 0.0, %v1563
      %v1565 = vpop.f32.mrb[0].mxu0
      %v1566 = vpop.f32.mrb[0].mxu0
      %v1567 = vadd.f32 0.0, %v1566
      %v1568 = vpop.f32.mrb[0].mxu0
      %1569 = vmatprep.mubr.bf16.mxu0 0
      %1570 = vmatmul.mubr.bf16.gmra.mrb[0].mxu0 %v1508
      %v1571 = vpop.f32.mrb[0].mxu0
      %v1572 = vadd.f32 0.0, %v1571
      %v1573 = vpop.f32.mrb[0].mxu0
      %v1574 = vpop.f32.mrb[0].mxu0
      %v1575 = vadd.f32 0.0, %v1574
      %v1576 = vpop.f32.mrb[0].mxu0
      %1577 = vdwg.mxu0
      %v1578 = vadd.f32 %v1302, %v1548
      %v1579 = vadd.f32 %v1303, %v1551
      %v1580 = vadd.f32 %v1304, %v1556
      %v1581 = vadd.f32 %v1305, %v1559
      %v1582 = vadd.f32 %v1306, %v1564
      %v1583 = vadd.f32 %v1307, %v1567
      %v1584 = vadd.f32 %v1308, %v1572
      %v1585 = vadd.f32 %v1309, %v1575
      %1587 = vset.pattern.permute.xlu0 0
      %1588 = vperm.xlu0 %1587, %v385
      %v1589 = vpop.permute.xlu0 %1588
      %1592 = vset.pattern.permute.xlu0 0
      %1593 = vperm.xlu0 %1592, %v386
      %v1594 = vpop.permute.xlu0 %1593
      %1597 = vset.pattern.permute.xlu0 0
      %1598 = vperm.xlu0 %1597, %v387
      %v1599 = vpop.permute.xlu0 %1598
      %1602 = vset.pattern.permute.xlu0 0
      %1603 = vperm.xlu0 %1602, %v388
      %v1604 = vpop.permute.xlu0 %1603
      %1607 = vset.pattern.permute.xlu0 0
      %1608 = vperm.xlu0 %1607, %v389
      %v1609 = vpop.permute.xlu0 %1608
      %1612 = vset.pattern.permute.xlu0 0
      %1613 = vperm.xlu0 %1612, %v390
      %v1614 = vpop.permute.xlu0 %1613
      %1617 = vset.pattern.permute.xlu0 0
      %1618 = vperm.xlu0 %1617, %v391
      %v1619 = vpop.permute.xlu0 %1618
      %1622 = vset.pattern.permute.xlu0 0
      %1623 = vperm.xlu0 %1622, %v392
      %v1624 = vpop.permute.xlu0 %1623
      %v1626 = vadd.f32 %v1578, %v1589
      %v1627 = vadd.f32 %v1579, %v1594
      %v1628 = vadd.f32 %v1580, %v1599
      %v1629 = vadd.f32 %v1581, %v1604
      %v1630 = vadd.f32 %v1582, %v1609
      %v1631 = vadd.f32 %v1583, %v1614
      %v1632 = vadd.f32 %v1584, %v1619
      %v1633 = vadd.f32 %v1585, %v1624
      %v1634 = vadd.f32 %v1626, %v393
      %v1635 = vadd.f32 %v1627, %v394
      %v1636 = vadd.f32 %v1628, %v395
      %v1637 = vadd.f32 %v1629, %v396
      %v1638 = vadd.f32 %v1630, %v397
      %v1639 = vadd.f32 %v1631, %v398
      %v1640 = vadd.f32 %v1632, %v399
      %v1641 = vadd.f32 %v1633, %v400
      %v1642 = vmin.f32 %v1634, 20.0
      %v1643 = vmin.f32 %v1635, 20.0
      %v1644 = vmin.f32 %v1636, 20.0
      %v1645 = vmin.f32 %v1637, 20.0
      %v1646 = vmin.f32 %v1638, 20.0
      %v1647 = vmin.f32 %v1639, 20.0
      %v1648 = vmin.f32 %v1640, 20.0
      %v1649 = vmin.f32 %v1641, 20.0
      %v1650 = vmul.f32 %v1642, 1.442695
      %v1651 = vpow.pop %v1650
      %v1652 = vmul.f32 %v1643, 1.442695
      %v1653 = vpow.pop %v1652
      %v1654 = vmul.f32 %v1644, 1.442695
      %v1655 = vpow.pop %v1654
      %v1656 = vmul.f32 %v1645, 1.442695
      %v1657 = vpow.pop %v1656
      %v1658 = vmul.f32 %v1646, 1.442695
      %v1659 = vpow.pop %v1658
      %v1660 = vmul.f32 %v1647, 1.442695
      %v1661 = vpow.pop %v1660
      %v1662 = vmul.f32 %v1648, 1.442695
      %v1663 = vpow.pop %v1662
      %v1664 = vmul.f32 %v1649, 1.442695
      %v1665 = vpow.pop %v1664
      %v1666 = vadd.f32 %v1651, 2.0
      %v1667 = vadd.f32 %v1653, 2.0
      %v1668 = vadd.f32 %v1655, 2.0
      %v1669 = vadd.f32 %v1657, 2.0
      %v1670 = vadd.f32 %v1659, 2.0
      %v1671 = vadd.f32 %v1661, 2.0
      %v1672 = vadd.f32 %v1663, 2.0
      %v1673 = vadd.f32 %v1665, 2.0
      %v1674 = vmul.f32 %v1651, %v1666
      %v1675 = vmul.f32 %v1653, %v1667
      %v1676 = vmul.f32 %v1655, %v1668
      %v1677 = vmul.f32 %v1657, %v1669
      %v1678 = vmul.f32 %v1659, %v1670
      %v1679 = vmul.f32 %v1661, %v1671
      %v1680 = vmul.f32 %v1663, %v1672
      %v1681 = vmul.f32 %v1665, %v1673
      %v1682 = vmul.f32 %v1634, %v1674
      %v1683 = vmul.f32 %v1635, %v1675
      %v1684 = vmul.f32 %v1636, %v1676
      %v1685 = vmul.f32 %v1637, %v1677
      %v1686 = vmul.f32 %v1638, %v1678
      %v1687 = vmul.f32 %v1639, %v1679
      %v1688 = vmul.f32 %v1640, %v1680
      %v1689 = vmul.f32 %v1641, %v1681
      %v1690 = vadd.f32 %v1674, 2.0
      %v1691 = vadd.f32 %v1675, 2.0
      %v1692 = vadd.f32 %v1676, 2.0
      %v1693 = vadd.f32 %v1677, 2.0
      %v1694 = vadd.f32 %v1678, 2.0
      %v1695 = vadd.f32 %v1679, 2.0
      %v1696 = vadd.f32 %v1680, 2.0
      %v1697 = vadd.f32 %v1681, 2.0
      %v1698 = vrcp.pop %v1690
      %v1699 = vrcp.pop %v1691
      %v1700 = vrcp.pop %v1692
      %v1701 = vrcp.pop %v1693
      %v1702 = vrcp.pop %v1694
      %v1703 = vrcp.pop %v1695
      %v1704 = vrcp.pop %v1696
      %v1705 = vrcp.pop %v1697
      %v1706 = vmul.f32 %v1682, %v1698
      %v1707 = vmul.f32 %v1683, %v1699
      %v1708 = vmul.f32 %v1684, %v1700
      %v1709 = vmul.f32 %v1685, %v1701
      %v1710 = vmul.f32 %v1686, %v1702
      %v1711 = vmul.f32 %v1687, %v1703
      %v1712 = vmul.f32 %v1688, %v1704
      %v1713 = vmul.f32 %v1689, %v1705
      %v1714 = vpack.c.bf16 %v1707, %v1706
      %v1715 = vpack.c.bf16 %v1709, %v1708
      %v1716 = vpack.c.bf16 %v1711, %v1710
      %v1717 = vpack.c.bf16 %v1713, %v1712
      %v1722 = vunpack.c.l.b16 %v1714
      %v1723 = vunpack.c.h.b16 %v1714
      %v1724 = vunpack.c.l.b16 %v1715
      %v1725 = vunpack.c.h.b16 %v1715
      %v1726 = vunpack.c.l.b16 %v1716
      %v1727 = vunpack.c.h.b16 %v1716
      %v1728 = vunpack.c.l.b16 %v1717
      %v1729 = vunpack.c.h.b16 %v1717
      %v1730 = vpack.c.b16 %v1722, %v1722
      %v1731 = vpack.c.b16 %v1723, %v1723
      %v1732 = vpack.c.b16 %v1724, %v1724
      %v1733 = vpack.c.b16 %v1725, %v1725
      %v1734 = vpack.c.b16 %v1726, %v1726
      %v1735 = vpack.c.b16 %v1727, %v1727
      %v1736 = vpack.c.b16 %v1728, %v1728
      %v1737 = vpack.c.b16 %v1729, %v1729
      %vm1746 = vcmask 125952
      %1747 = vst.msk [vmem:[%s305] sm:$0xf] %vm1746, %v1730
      %1748 = vst.msk [vmem:[%s305 + $0x4] sm:$0xf] %vm1746, %v1731
      %1749 = vst.msk [vmem:[%s305 + $0x8] sm:$0xf] %vm1746, %v1732
      %1750 = vst.msk [vmem:[%s305 + $0xc] sm:$0xf] %vm1746, %v1733
      %1751 = vst.msk [vmem:[%s305 + $0x10] sm:$0xf] %vm1746, %v1734
      %1752 = vst.msk [vmem:[%s305 + $0x14] sm:$0xf] %vm1746, %v1735
      %1753 = vst.msk [vmem:[%s305 + $0x18] sm:$0xf] %vm1746, %v1736
      %1754 = vst.msk [vmem:[%s305 + $0x1c] sm:$0xf] %vm1746, %v1737
      %p1755 = scmp.lt.s32.totalorder %s19, 1
      %s1756 = scalar_select %p1755, %s19, 1
      %s1757 = smul.addr %s1756, 8
      %s1758 = smul.addr %s1757, 4
      %s1759 = scalar_lea.vmem %s8, %s1758
      // Predicated region
      $region53: #{tpu_custom_call.1} parent=51 // pred_check
        %p1760 = pneg %p210
      $region54: #{tpu_custom_call.1} parent=51 // pred_check_branch
        %1762 = sbr.rel (%p1760) target = $region56
      $region55: #{tpu_custom_call.1} parent=51 // pred_region
        _
      $region56: #{tpu_custom_call.1} parent=51 // pred_fallthru
        _
    $region52: #{tpu_custom_call.1} parent=5 // pred_fallthru
      _
    %p1763 = scmp.le.s32.totalorder 2, %s14
    // Predicated region
    $region57: #{tpu_custom_call.1} parent=5 // pred_check
      %p1764 = pneg %p1763
    $region58: #{tpu_custom_call.1} parent=5 // pred_check_branch
      %1766 = sbr.rel (%p1764) target = $region60
    $region59: #{tpu_custom_call.1} parent=5 // pred_region
      %s1767 = ssub.s32 %s14, 2
      // Predicated region
      $region61: #{tpu_custom_call.1} parent=59 // pred_check
        %p1768 = pneg %p216
      $region62: #{tpu_custom_call.1} parent=59 // pred_check_branch
        %1770 = sbr.rel (%p1768) target = $region64
      $region63: #{tpu_custom_call.1} parent=59 // pred_region
        %p1771 = scmp.lt.s32.totalorder %s20, 1
        %s1772 = scalar_select %p1771, %s20, 1
        %s1773 = smul.addr %s1772, 8
        %s1774 = smul.addr %s1773, 4
        %s1775 = scalar_lea.vmem %s8, %s1774
      $region64: #{tpu_custom_call.1} parent=59 // pred_fallthru
        _
    $region60: #{tpu_custom_call.1} parent=5 // pred_fallthru
      _
  $region6: #{tpu_custom_call.1} parent=0 // loop_footer
    %s18 = sadd.s32 1, %s14
  $region7: #{tpu_custom_call.1} parent=0 // loop_footer_branch
    %13 = sbr.rel target = $region3
  $region8: #{tpu_custom_call.1} parent=0 // loop_exit
    _

</llo_original>
